<compile_context>
chip_gen: v7x
topology: tpu7x:2x2x1
jax: 0.10.0
libtpu: 0.0.40
codegen_flags: <defaults>
</compile_context>

<pallas_src>
import functools

import jax
import jax.numpy as jnp
from jax import lax
from jax.experimental import pallas as pl
from jax.experimental.pallas import tpu as pltpu

# ----------------------------- hyper-parameters ------------------------------
HC = [4, 4]              # hidden-channel list (uniform -> module wiring is consistent)
N_CONV = len(HC)         # 2
IN_CHANNELS = HC[-1]     # 4
OUT_CHANNELS = 4
KERNEL_SIZE = 3          # [1, 3] kernel, circular padding (0, 1) along W
INPUT_SIZE = 128         # W  (lane axis)
H_ROWS = 8               # H  (inferred by l.view(B, C, -1, W))
BATCH = 2
BN_EPS = 1e-5


# --------------------------------- kernel ------------------------------------
def _decoder_kernel(x_ref, skip0_ref, skip1_ref,
                    w0_ref, g0_ref, bt0_ref,
                    w1_ref, g1_ref, bt1_ref,
                    wf_ref, bf_ref,
                    o_ref, *, chans, ksize, width, eps, inv_count):
    """Fused 3-stage decoder:
       stage0: ReLU(BN(conv(x + skip0)))          (conv bias dropped: cancelled by BN)
       stage1: ReLU(BN(conv(. + skip1)))
       final : conv(.) + bias                     (single dense store)
       Activations are carried as lists of per-channel (B, H, W) planes.
    """
    (c0_in, c0_out), (c1_in, c1_out), (cf_in, cf_out) = chans
    p = (ksize - 1) // 2

    def circ_conv(planes, w_ref, c_in, c_out):
        # out[w] = sum_k w_k * x[(w + k - p) mod W]  ==  sum_k w_k * roll(x, p - k)[w]
        # Pre-roll every input plane once per tap; reuse across all output channels.
        rolled = []
        for ci in range(c_in):
            taps = []
            for k in range(ksize):
                s = (p - k) % width                          # static, non-negative
                taps.append(planes[ci] if s == 0
                            else pltpu.roll(planes[ci], shift=s, axis=2))
            rolled.append(taps)
        outs = []
        for co in range(c_out):
            acc = None
            for ci in range(c_in):
                for k in range(ksize):
                    wv = w_ref[(co * c_in + ci) * ksize + k]  # scalar from SMEM
                    t = wv * rolled[ci][k]                    # (B, H, W) FMA
                    acc = t if acc is None else acc + t
            outs.append(acc)
        return outs                                           # list of (B, H, W)

    def bn_relu(planes, g_ref, bt_ref):
        outs = []
        for co, y in enumerate(planes):
            # Independent reductions -> no mean->var serial chain.
            mean = jnp.sum(y) * inv_count
            ex2 = jnp.sum(y * y) * inv_count
            var = jnp.maximum(ex2 - mean * mean, 0.0)         # biased variance
            inv = lax.rsqrt(var + eps)
            outs.append(jnp.maximum((y - mean) * (inv * g_ref[co]) + bt_ref[co], 0.0))
        return outs

    # Stage 0 (block -1): skip add + conv + BN + ReLU
    xs = [x_ref[:, ci, :, :] + skip0_ref[:, ci, :, :] for ci in range(c0_in)]
    xs = bn_relu(circ_conv(xs, w0_ref, c0_in, c0_out), g0_ref, bt0_ref)

    # Stage 1 (block 0): skip add + conv + BN + ReLU
    xs = [xs[ci] + skip1_ref[:, ci, :, :] for ci in range(c1_in)]
    xs = bn_relu(circ_conv(xs, w1_ref, c1_in, c1_out), g1_ref, bt1_ref)

    # Final stage: conv + bias (no BN / activation), single dense lane-wide store.
    planes = circ_conv(xs, wf_ref, cf_in, cf_out)
    o_ref[...] = jnp.stack([planes[co] + bf_ref[co] for co in range(cf_out)], axis=1)


# ------------------------------ parameter init -------------------------------
def init_params(key):
    keys = jax.random.split(key, 16)
    kidx = 0
    # Channel wiring of the module's blocks.
    chans = [(HC[-1], HC[-1])]                                  # block -1 (Conv2d)
    for i in range(N_CONV - 1):
        chans.append((HC[-i - 1], HC[-i - 2]))                  # block i
    blocks = []
    for (cin, cout) in chans:
        w = 0.3 * jax.random.normal(keys[kidx], (cout, cin, KERNEL_SIZE), jnp.float32); kidx += 1
        b = 0.1 * jax.random.normal(keys[kidx], (cout,), jnp.float32); kidx += 1
        g = 1.0 + 0.1 * jax.random.normal(keys[kidx], (cout,), jnp.float32); kidx += 1
        bt = 0.1 * jax.random.normal(keys[kidx], (cout,), jnp.float32); kidx += 1
        blocks.append((w, b, g, bt))
    wf = 0.3 * jax.random.normal(keys[kidx], (OUT_CHANNELS, HC[0], KERNEL_SIZE), jnp.float32); kidx += 1
    bf = 0.1 * jax.random.normal(keys[kidx], (OUT_CHANNELS,), jnp.float32); kidx += 1
    return {"blocks": blocks, "final": (wf, bf)}


# ------------------------------ model forward --------------------------------
def decoder2d_forward(l, outputs, params):
    x = l.reshape(l.shape[0], IN_CHANNELS, -1, INPUT_SIZE)
    B, _, H, W = x.shape

    # NOTE: conv biases of the BN stages are intentionally NOT passed to the kernel:
    # train-mode BatchNorm subtracts the per-channel mean, which cancels them exactly.
    (w0, _b0, g0, bt0), (w1, _b1, g1, bt1) = params["blocks"]
    wf, bf = params["final"]

    chan_cfg = ((w0.shape[1], w0.shape[0]),
                (w1.shape[1], w1.shape[0]),
                (wf.shape[1], wf.shape[0]))

    kernel = functools.partial(
        _decoder_kernel, chans=chan_cfg, ksize=KERNEL_SIZE, width=W,
        eps=BN_EPS, inv_count=1.0 / float(B * H * W))

    vmem = pl.BlockSpec(memory_space=pltpu.MemorySpace.VMEM)
    smem = pl.BlockSpec(memory_space=pltpu.MemorySpace.SMEM)

    return pl.pallas_call(
        kernel,
        out_shape=jax.ShapeDtypeStruct((B, OUT_CHANNELS, H, W), jnp.float32),
        in_specs=[vmem, vmem, vmem,                 # x, skip0, skip1
                  smem, smem, smem,                 # w0 (flat), gamma0, beta0
                  smem, smem, smem,                 # w1 (flat), gamma1, beta1
                  smem, smem],                      # wf (flat), bias_f
        out_specs=vmem,
    )(x, outputs[-1], outputs[-2],
      w0.reshape(-1), g0, bt0,
      w1.reshape(-1), g1, bt1,
      wf.reshape(-1), bf)


# -------------------------- pure-JAX reference check -------------------------
def _ref_circ_conv(x, w, b):
    p = (w.shape[-1] - 1) // 2
    xpad = jnp.concatenate([x[..., -p:], x, x[..., :p]], axis=-1)
    y = lax.conv_general_dilated(
        xpad, w[:, :, None, :], window_strides=(1, 1), padding="VALID",
        dimension_numbers=("NCHW", "OIHW", "NCHW"),
        precision=lax.Precision.HIGHEST)
    return y + b[None, :, None, None]


def decoder2d_reference(l, outputs, params):
    x = l.reshape(l.shape[0], IN_CHANNELS, -1, INPUT_SIZE)
    for i in range(N_CONV):
        w, b, g, bt = params["blocks"][i]
        y = _ref_circ_conv(x + outputs[-i - 1], w, b)
        mean = y.mean(axis=(0, 2, 3), keepdims=True)
        var = ((y - mean) ** 2).mean(axis=(0, 2, 3), keepdims=True)
        y = (y - mean) / jnp.sqrt(var + BN_EPS)
        y = y * g[None, :, None, None] + bt[None, :, None, None]
        x = jnp.maximum(y, 0.0)
    wf, bf = params["final"]
    return _ref_circ_conv(x, wf, bf)


# ----------------------------------- main -------------------------------------
if __name__ == "__main__":
    key = jax.random.PRNGKey(0)
    k_l, k_o0, k_o1, k_p = jax.random.split(key, 4)

    l = jax.random.normal(k_l, (BATCH, IN_CHANNELS * H_ROWS * INPUT_SIZE), jnp.float32)
    outputs = [
        jax.random.normal(k_o0, (BATCH, HC[-1], H_ROWS, INPUT_SIZE), jnp.float32),
        jax.random.normal(k_o1, (BATCH, HC[-1], H_ROWS, INPUT_SIZE), jnp.float32),
    ]
    params = init_params(k_p)

    out = decoder2d_forward(l, outputs, params)
    out = jax.block_until_ready(out)

    ref = decoder2d_reference(l, outputs, params)
    assert out.shape == (BATCH, OUT_CHANNELS, H_ROWS, INPUT_SIZE), out.shape
    max_err = float(jnp.max(jnp.abs(out - ref)))
    assert jnp.allclose(out, ref, atol=2e-3, rtol=2e-3), f"max abs err {max_err}"

    print("KERNEL_OK")
</pallas_src>

<mosaic_0001>
module attributes {stable_mosaic.version = 11 : i64} {
  func.func @_decoder_kernel(%arg0: memref<2x4x8x128xf32, #tpu.memory_space<vmem>>, %arg1: memref<2x4x8x128xf32, #tpu.memory_space<vmem>>, %arg2: memref<2x4x8x128xf32, #tpu.memory_space<vmem>>, %arg3: memref<48xf32, #tpu.memory_space<smem>>, %arg4: memref<4xf32, #tpu.memory_space<smem>>, %arg5: memref<4xf32, #tpu.memory_space<smem>>, %arg6: memref<48xf32, #tpu.memory_space<smem>>, %arg7: memref<4xf32, #tpu.memory_space<smem>>, %arg8: memref<4xf32, #tpu.memory_space<smem>>, %arg9: memref<48xf32, #tpu.memory_space<smem>>, %arg10: memref<4xf32, #tpu.memory_space<smem>>, %arg11: memref<2x4x8x128xf32, #tpu.memory_space<vmem>>) attributes {dimension_semantics = [], scalar_prefetch = 0 : i64, scratch_operands = 0 : i64, tpu.core_type = #tpu.core_type<tc>} {
    %c0 = arith.constant 0 : index
    %c0_0 = arith.constant 0 : index
    %c0_1 = arith.constant 0 : index
    %c0_2 = arith.constant 0 : index
    %0 = vector.load %arg0[%c0, %c0_0, %c0_1, %c0_2] : memref<2x4x8x128xf32, #tpu.memory_space<vmem>>, vector<2x1x8x128xf32>
    %1 = vector.shape_cast %0 : vector<2x1x8x128xf32> to vector<2x8x128xf32>
    %c0_3 = arith.constant 0 : index
    %c0_4 = arith.constant 0 : index
    %c0_5 = arith.constant 0 : index
    %c0_6 = arith.constant 0 : index
    %2 = vector.load %arg1[%c0_3, %c0_4, %c0_5, %c0_6] : memref<2x4x8x128xf32, #tpu.memory_space<vmem>>, vector<2x1x8x128xf32>
    %3 = vector.shape_cast %2 : vector<2x1x8x128xf32> to vector<2x8x128xf32>
    %4 = arith.addf %1, %3 : vector<2x8x128xf32>
    %c0_7 = arith.constant 0 : index
    %c1 = arith.constant 1 : index
    %c0_8 = arith.constant 0 : index
    %c0_9 = arith.constant 0 : index
    %5 = vector.load %arg0[%c0_7, %c1, %c0_8, %c0_9] : memref<2x4x8x128xf32, #tpu.memory_space<vmem>>, vector<2x1x8x128xf32>
    %6 = vector.shape_cast %5 : vector<2x1x8x128xf32> to vector<2x8x128xf32>
    %c0_10 = arith.constant 0 : index
    %c1_11 = arith.constant 1 : index
    %c0_12 = arith.constant 0 : index
    %c0_13 = arith.constant 0 : index
    %7 = vector.load %arg1[%c0_10, %c1_11, %c0_12, %c0_13] : memref<2x4x8x128xf32, #tpu.memory_space<vmem>>, vector<2x1x8x128xf32>
    %8 = vector.shape_cast %7 : vector<2x1x8x128xf32> to vector<2x8x128xf32>
    %9 = arith.addf %6, %8 : vector<2x8x128xf32>
    %c0_14 = arith.constant 0 : index
    %c2 = arith.constant 2 : index
    %c0_15 = arith.constant 0 : index
    %c0_16 = arith.constant 0 : index
    %10 = vector.load %arg0[%c0_14, %c2, %c0_15, %c0_16] : memref<2x4x8x128xf32, #tpu.memory_space<vmem>>, vector<2x1x8x128xf32>
    %11 = vector.shape_cast %10 : vector<2x1x8x128xf32> to vector<2x8x128xf32>
    %c0_17 = arith.constant 0 : index
    %c2_18 = arith.constant 2 : index
    %c0_19 = arith.constant 0 : index
    %c0_20 = arith.constant 0 : index
    %12 = vector.load %arg1[%c0_17, %c2_18, %c0_19, %c0_20] : memref<2x4x8x128xf32, #tpu.memory_space<vmem>>, vector<2x1x8x128xf32>
    %13 = vector.shape_cast %12 : vector<2x1x8x128xf32> to vector<2x8x128xf32>
    %14 = arith.addf %11, %13 : vector<2x8x128xf32>
    %c0_21 = arith.constant 0 : index
    %c3 = arith.constant 3 : index
    %c0_22 = arith.constant 0 : index
    %c0_23 = arith.constant 0 : index
    %15 = vector.load %arg0[%c0_21, %c3, %c0_22, %c0_23] : memref<2x4x8x128xf32, #tpu.memory_space<vmem>>, vector<2x1x8x128xf32>
    %16 = vector.shape_cast %15 : vector<2x1x8x128xf32> to vector<2x8x128xf32>
    %c0_24 = arith.constant 0 : index
    %c3_25 = arith.constant 3 : index
    %c0_26 = arith.constant 0 : index
    %c0_27 = arith.constant 0 : index
    %17 = vector.load %arg1[%c0_24, %c3_25, %c0_26, %c0_27] : memref<2x4x8x128xf32, #tpu.memory_space<vmem>>, vector<2x1x8x128xf32>
    %18 = vector.shape_cast %17 : vector<2x1x8x128xf32> to vector<2x8x128xf32>
    %19 = arith.addf %16, %18 : vector<2x8x128xf32>
    %c1_i32 = arith.constant 1 : i32
    %20 = tpu.dynamic_rotate %4 by %c1_i32 dim 2 : vector<2x8x128xf32>, i32 -> vector<2x8x128xf32>
    %c127_i32 = arith.constant 127 : i32
    %21 = tpu.dynamic_rotate %4 by %c127_i32 dim 2 : vector<2x8x128xf32>, i32 -> vector<2x8x128xf32>
    %c1_i32_28 = arith.constant 1 : i32
    %22 = tpu.dynamic_rotate %9 by %c1_i32_28 dim 2 : vector<2x8x128xf32>, i32 -> vector<2x8x128xf32>
    %c127_i32_29 = arith.constant 127 : i32
    %23 = tpu.dynamic_rotate %9 by %c127_i32_29 dim 2 : vector<2x8x128xf32>, i32 -> vector<2x8x128xf32>
    %c1_i32_30 = arith.constant 1 : i32
    %24 = tpu.dynamic_rotate %14 by %c1_i32_30 dim 2 : vector<2x8x128xf32>, i32 -> vector<2x8x128xf32>
    %c127_i32_31 = arith.constant 127 : i32
    %25 = tpu.dynamic_rotate %14 by %c127_i32_31 dim 2 : vector<2x8x128xf32>, i32 -> vector<2x8x128xf32>
    %c1_i32_32 = arith.constant 1 : i32
    %26 = tpu.dynamic_rotate %19 by %c1_i32_32 dim 2 : vector<2x8x128xf32>, i32 -> vector<2x8x128xf32>
    %c127_i32_33 = arith.constant 127 : i32
    %27 = tpu.dynamic_rotate %19 by %c127_i32_33 dim 2 : vector<2x8x128xf32>, i32 -> vector<2x8x128xf32>
    %c0_34 = arith.constant 0 : index
    %28 = memref.load %arg3[%c0_34] : memref<48xf32, #tpu.memory_space<smem>>
    %29 = vector.broadcast %28 : f32 to vector<2x8x128xf32>
    %30 = arith.mulf %29, %20 : vector<2x8x128xf32>
    %c1_35 = arith.constant 1 : index
    %31 = memref.load %arg3[%c1_35] : memref<48xf32, #tpu.memory_space<smem>>
    %32 = vector.broadcast %31 : f32 to vector<2x8x128xf32>
    %33 = arith.mulf %32, %4 : vector<2x8x128xf32>
    %34 = arith.addf %30, %33 : vector<2x8x128xf32>
    %c2_36 = arith.constant 2 : index
    %35 = memref.load %arg3[%c2_36] : memref<48xf32, #tpu.memory_space<smem>>
    %36 = vector.broadcast %35 : f32 to vector<2x8x128xf32>
    %37 = arith.mulf %36, %21 : vector<2x8x128xf32>
    %38 = arith.addf %34, %37 : vector<2x8x128xf32>
    %c3_37 = arith.constant 3 : index
    %39 = memref.load %arg3[%c3_37] : memref<48xf32, #tpu.memory_space<smem>>
    %40 = vector.broadcast %39 : f32 to vector<2x8x128xf32>
    %41 = arith.mulf %40, %22 : vector<2x8x128xf32>
    %42 = arith.addf %38, %41 : vector<2x8x128xf32>
    %c4 = arith.constant 4 : index
    %43 = memref.load %arg3[%c4] : memref<48xf32, #tpu.memory_space<smem>>
    %44 = vector.broadcast %43 : f32 to vector<2x8x128xf32>
    %45 = arith.mulf %44, %9 : vector<2x8x128xf32>
    %46 = arith.addf %42, %45 : vector<2x8x128xf32>
    %c5 = arith.constant 5 : index
    %47 = memref.load %arg3[%c5] : memref<48xf32, #tpu.memory_space<smem>>
    %48 = vector.broadcast %47 : f32 to vector<2x8x128xf32>
    %49 = arith.mulf %48, %23 : vector<2x8x128xf32>
    %50 = arith.addf %46, %49 : vector<2x8x128xf32>
    %c6 = arith.constant 6 : index
    %51 = memref.load %arg3[%c6] : memref<48xf32, #tpu.memory_space<smem>>
    %52 = vector.broadcast %51 : f32 to vector<2x8x128xf32>
    %53 = arith.mulf %52, %24 : vector<2x8x128xf32>
    %54 = arith.addf %50, %53 : vector<2x8x128xf32>
    %c7 = arith.constant 7 : index
    %55 = memref.load %arg3[%c7] : memref<48xf32, #tpu.memory_space<smem>>
    %56 = vector.broadcast %55 : f32 to vector<2x8x128xf32>
    %57 = arith.mulf %56, %14 : vector<2x8x128xf32>
    %58 = arith.addf %54, %57 : vector<2x8x128xf32>
    %c8 = arith.constant 8 : index
    %59 = memref.load %arg3[%c8] : memref<48xf32, #tpu.memory_space<smem>>
    %60 = vector.broadcast %59 : f32 to vector<2x8x128xf32>
    %61 = arith.mulf %60, %25 : vector<2x8x128xf32>
    %62 = arith.addf %58, %61 : vector<2x8x128xf32>
    %c9 = arith.constant 9 : index
    %63 = memref.load %arg3[%c9] : memref<48xf32, #tpu.memory_space<smem>>
    %64 = vector.broadcast %63 : f32 to vector<2x8x128xf32>
    %65 = arith.mulf %64, %26 : vector<2x8x128xf32>
    %66 = arith.addf %62, %65 : vector<2x8x128xf32>
    %c10 = arith.constant 10 : index
    %67 = memref.load %arg3[%c10] : memref<48xf32, #tpu.memory_space<smem>>
    %68 = vector.broadcast %67 : f32 to vector<2x8x128xf32>
    %69 = arith.mulf %68, %19 : vector<2x8x128xf32>
    %70 = arith.addf %66, %69 : vector<2x8x128xf32>
    %c11 = arith.constant 11 : index
    %71 = memref.load %arg3[%c11] : memref<48xf32, #tpu.memory_space<smem>>
    %72 = vector.broadcast %71 : f32 to vector<2x8x128xf32>
    %73 = arith.mulf %72, %27 : vector<2x8x128xf32>
    %74 = arith.addf %70, %73 : vector<2x8x128xf32>
    %c12 = arith.constant 12 : index
    %75 = memref.load %arg3[%c12] : memref<48xf32, #tpu.memory_space<smem>>
    %76 = vector.broadcast %75 : f32 to vector<2x8x128xf32>
    %77 = arith.mulf %76, %20 : vector<2x8x128xf32>
    %c13 = arith.constant 13 : index
    %78 = memref.load %arg3[%c13] : memref<48xf32, #tpu.memory_space<smem>>
    %79 = vector.broadcast %78 : f32 to vector<2x8x128xf32>
    %80 = arith.mulf %79, %4 : vector<2x8x128xf32>
    %81 = arith.addf %77, %80 : vector<2x8x128xf32>
    %c14 = arith.constant 14 : index
    %82 = memref.load %arg3[%c14] : memref<48xf32, #tpu.memory_space<smem>>
    %83 = vector.broadcast %82 : f32 to vector<2x8x128xf32>
    %84 = arith.mulf %83, %21 : vector<2x8x128xf32>
    %85 = arith.addf %81, %84 : vector<2x8x128xf32>
    %c15 = arith.constant 15 : index
    %86 = memref.load %arg3[%c15] : memref<48xf32, #tpu.memory_space<smem>>
    %87 = vector.broadcast %86 : f32 to vector<2x8x128xf32>
    %88 = arith.mulf %87, %22 : vector<2x8x128xf32>
    %89 = arith.addf %85, %88 : vector<2x8x128xf32>
    %c16 = arith.constant 16 : index
    %90 = memref.load %arg3[%c16] : memref<48xf32, #tpu.memory_space<smem>>
    %91 = vector.broadcast %90 : f32 to vector<2x8x128xf32>
    %92 = arith.mulf %91, %9 : vector<2x8x128xf32>
    %93 = arith.addf %89, %92 : vector<2x8x128xf32>
    %c17 = arith.constant 17 : index
    %94 = memref.load %arg3[%c17] : memref<48xf32, #tpu.memory_space<smem>>
    %95 = vector.broadcast %94 : f32 to vector<2x8x128xf32>
    %96 = arith.mulf %95, %23 : vector<2x8x128xf32>
    %97 = arith.addf %93, %96 : vector<2x8x128xf32>
    %c18 = arith.constant 18 : index
    %98 = memref.load %arg3[%c18] : memref<48xf32, #tpu.memory_space<smem>>
    %99 = vector.broadcast %98 : f32 to vector<2x8x128xf32>
    %100 = arith.mulf %99, %24 : vector<2x8x128xf32>
    %101 = arith.addf %97, %100 : vector<2x8x128xf32>
    %c19 = arith.constant 19 : index
    %102 = memref.load %arg3[%c19] : memref<48xf32, #tpu.memory_space<smem>>
    %103 = vector.broadcast %102 : f32 to vector<2x8x128xf32>
    %104 = arith.mulf %103, %14 : vector<2x8x128xf32>
    %105 = arith.addf %101, %104 : vector<2x8x128xf32>
    %c20 = arith.constant 20 : index
    %106 = memref.load %arg3[%c20] : memref<48xf32, #tpu.memory_space<smem>>
    %107 = vector.broadcast %106 : f32 to vector<2x8x128xf32>
    %108 = arith.mulf %107, %25 : vector<2x8x128xf32>
    %109 = arith.addf %105, %108 : vector<2x8x128xf32>
    %c21 = arith.constant 21 : index
    %110 = memref.load %arg3[%c21] : memref<48xf32, #tpu.memory_space<smem>>
    %111 = vector.broadcast %110 : f32 to vector<2x8x128xf32>
    %112 = arith.mulf %111, %26 : vector<2x8x128xf32>
    %113 = arith.addf %109, %112 : vector<2x8x128xf32>
    %c22 = arith.constant 22 : index
    %114 = memref.load %arg3[%c22] : memref<48xf32, #tpu.memory_space<smem>>
    %115 = vector.broadcast %114 : f32 to vector<2x8x128xf32>
    %116 = arith.mulf %115, %19 : vector<2x8x128xf32>
    %117 = arith.addf %113, %116 : vector<2x8x128xf32>
    %c23 = arith.constant 23 : index
    %118 = memref.load %arg3[%c23] : memref<48xf32, #tpu.memory_space<smem>>
    %119 = vector.broadcast %118 : f32 to vector<2x8x128xf32>
    %120 = arith.mulf %119, %27 : vector<2x8x128xf32>
    %121 = arith.addf %117, %120 : vector<2x8x128xf32>
    %c24 = arith.constant 24 : index
    %122 = memref.load %arg3[%c24] : memref<48xf32, #tpu.memory_space<smem>>
    %123 = vector.broadcast %122 : f32 to vector<2x8x128xf32>
    %124 = arith.mulf %123, %20 : vector<2x8x128xf32>
    %c25 = arith.constant 25 : index
    %125 = memref.load %arg3[%c25] : memref<48xf32, #tpu.memory_space<smem>>
    %126 = vector.broadcast %125 : f32 to vector<2x8x128xf32>
    %127 = arith.mulf %126, %4 : vector<2x8x128xf32>
    %128 = arith.addf %124, %127 : vector<2x8x128xf32>
    %c26 = arith.constant 26 : index
    %129 = memref.load %arg3[%c26] : memref<48xf32, #tpu.memory_space<smem>>
    %130 = vector.broadcast %129 : f32 to vector<2x8x128xf32>
    %131 = arith.mulf %130, %21 : vector<2x8x128xf32>
    %132 = arith.addf %128, %131 : vector<2x8x128xf32>
    %c27 = arith.constant 27 : index
    %133 = memref.load %arg3[%c27] : memref<48xf32, #tpu.memory_space<smem>>
    %134 = vector.broadcast %133 : f32 to vector<2x8x128xf32>
    %135 = arith.mulf %134, %22 : vector<2x8x128xf32>
    %136 = arith.addf %132, %135 : vector<2x8x128xf32>
    %c28 = arith.constant 28 : index
    %137 = memref.load %arg3[%c28] : memref<48xf32, #tpu.memory_space<smem>>
    %138 = vector.broadcast %137 : f32 to vector<2x8x128xf32>
    %139 = arith.mulf %138, %9 : vector<2x8x128xf32>
    %140 = arith.addf %136, %139 : vector<2x8x128xf32>
    %c29 = arith.constant 29 : index
    %141 = memref.load %arg3[%c29] : memref<48xf32, #tpu.memory_space<smem>>
    %142 = vector.broadcast %141 : f32 to vector<2x8x128xf32>
    %143 = arith.mulf %142, %23 : vector<2x8x128xf32>
    %144 = arith.addf %140, %143 : vector<2x8x128xf32>
    %c30 = arith.constant 30 : index
    %145 = memref.load %arg3[%c30] : memref<48xf32, #tpu.memory_space<smem>>
    %146 = vector.broadcast %145 : f32 to vector<2x8x128xf32>
    %147 = arith.mulf %146, %24 : vector<2x8x128xf32>
    %148 = arith.addf %144, %147 : vector<2x8x128xf32>
    %c31 = arith.constant 31 : index
    %149 = memref.load %arg3[%c31] : memref<48xf32, #tpu.memory_space<smem>>
    %150 = vector.broadcast %149 : f32 to vector<2x8x128xf32>
    %151 = arith.mulf %150, %14 : vector<2x8x128xf32>
    %152 = arith.addf %148, %151 : vector<2x8x128xf32>
    %c32 = arith.constant 32 : index
    %153 = memref.load %arg3[%c32] : memref<48xf32, #tpu.memory_space<smem>>
    %154 = vector.broadcast %153 : f32 to vector<2x8x128xf32>
    %155 = arith.mulf %154, %25 : vector<2x8x128xf32>
    %156 = arith.addf %152, %155 : vector<2x8x128xf32>
    %c33 = arith.constant 33 : index
    %157 = memref.load %arg3[%c33] : memref<48xf32, #tpu.memory_space<smem>>
    %158 = vector.broadcast %157 : f32 to vector<2x8x128xf32>
    %159 = arith.mulf %158, %26 : vector<2x8x128xf32>
    %160 = arith.addf %156, %159 : vector<2x8x128xf32>
    %c34 = arith.constant 34 : index
    %161 = memref.load %arg3[%c34] : memref<48xf32, #tpu.memory_space<smem>>
    %162 = vector.broadcast %161 : f32 to vector<2x8x128xf32>
    %163 = arith.mulf %162, %19 : vector<2x8x128xf32>
    %164 = arith.addf %160, %163 : vector<2x8x128xf32>
    %c35 = arith.constant 35 : index
    %165 = memref.load %arg3[%c35] : memref<48xf32, #tpu.memory_space<smem>>
    %166 = vector.broadcast %165 : f32 to vector<2x8x128xf32>
    %167 = arith.mulf %166, %27 : vector<2x8x128xf32>
    %168 = arith.addf %164, %167 : vector<2x8x128xf32>
    %c36 = arith.constant 36 : index
    %169 = memref.load %arg3[%c36] : memref<48xf32, #tpu.memory_space<smem>>
    %170 = vector.broadcast %169 : f32 to vector<2x8x128xf32>
    %171 = arith.mulf %170, %20 : vector<2x8x128xf32>
    %c37 = arith.constant 37 : index
    %172 = memref.load %arg3[%c37] : memref<48xf32, #tpu.memory_space<smem>>
    %173 = vector.broadcast %172 : f32 to vector<2x8x128xf32>
    %174 = arith.mulf %173, %4 : vector<2x8x128xf32>
    %175 = arith.addf %171, %174 : vector<2x8x128xf32>
    %c38 = arith.constant 38 : index
    %176 = memref.load %arg3[%c38] : memref<48xf32, #tpu.memory_space<smem>>
    %177 = vector.broadcast %176 : f32 to vector<2x8x128xf32>
    %178 = arith.mulf %177, %21 : vector<2x8x128xf32>
    %179 = arith.addf %175, %178 : vector<2x8x128xf32>
    %c39 = arith.constant 39 : index
    %180 = memref.load %arg3[%c39] : memref<48xf32, #tpu.memory_space<smem>>
    %181 = vector.broadcast %180 : f32 to vector<2x8x128xf32>
    %182 = arith.mulf %181, %22 : vector<2x8x128xf32>
    %183 = arith.addf %179, %182 : vector<2x8x128xf32>
    %c40 = arith.constant 40 : index
    %184 = memref.load %arg3[%c40] : memref<48xf32, #tpu.memory_space<smem>>
    %185 = vector.broadcast %184 : f32 to vector<2x8x128xf32>
    %186 = arith.mulf %185, %9 : vector<2x8x128xf32>
    %187 = arith.addf %183, %186 : vector<2x8x128xf32>
    %c41 = arith.constant 41 : index
    %188 = memref.load %arg3[%c41] : memref<48xf32, #tpu.memory_space<smem>>
    %189 = vector.broadcast %188 : f32 to vector<2x8x128xf32>
    %190 = arith.mulf %189, %23 : vector<2x8x128xf32>
    %191 = arith.addf %187, %190 : vector<2x8x128xf32>
    %c42 = arith.constant 42 : index
    %192 = memref.load %arg3[%c42] : memref<48xf32, #tpu.memory_space<smem>>
    %193 = vector.broadcast %192 : f32 to vector<2x8x128xf32>
    %194 = arith.mulf %193, %24 : vector<2x8x128xf32>
    %195 = arith.addf %191, %194 : vector<2x8x128xf32>
    %c43 = arith.constant 43 : index
    %196 = memref.load %arg3[%c43] : memref<48xf32, #tpu.memory_space<smem>>
    %197 = vector.broadcast %196 : f32 to vector<2x8x128xf32>
    %198 = arith.mulf %197, %14 : vector<2x8x128xf32>
    %199 = arith.addf %195, %198 : vector<2x8x128xf32>
    %c44 = arith.constant 44 : index
    %200 = memref.load %arg3[%c44] : memref<48xf32, #tpu.memory_space<smem>>
    %201 = vector.broadcast %200 : f32 to vector<2x8x128xf32>
    %202 = arith.mulf %201, %25 : vector<2x8x128xf32>
    %203 = arith.addf %199, %202 : vector<2x8x128xf32>
    %c45 = arith.constant 45 : index
    %204 = memref.load %arg3[%c45] : memref<48xf32, #tpu.memory_space<smem>>
    %205 = vector.broadcast %204 : f32 to vector<2x8x128xf32>
    %206 = arith.mulf %205, %26 : vector<2x8x128xf32>
    %207 = arith.addf %203, %206 : vector<2x8x128xf32>
    %c46 = arith.constant 46 : index
    %208 = memref.load %arg3[%c46] : memref<48xf32, #tpu.memory_space<smem>>
    %209 = vector.broadcast %208 : f32 to vector<2x8x128xf32>
    %210 = arith.mulf %209, %19 : vector<2x8x128xf32>
    %211 = arith.addf %207, %210 : vector<2x8x128xf32>
    %c47 = arith.constant 47 : index
    %212 = memref.load %arg3[%c47] : memref<48xf32, #tpu.memory_space<smem>>
    %213 = vector.broadcast %212 : f32 to vector<2x8x128xf32>
    %214 = arith.mulf %213, %27 : vector<2x8x128xf32>
    %215 = arith.addf %211, %214 : vector<2x8x128xf32>
    %216 = vector.shape_cast %74 : vector<2x8x128xf32> to vector<1x2x8x128xf32>
    %cst = arith.constant dense<0.000000e+00> : vector<1xf32>
    %217 = vector.multi_reduction <add>, %216, %cst [1, 2, 3] : vector<1x2x8x128xf32> to vector<1xf32>
    %218 = vector.shape_cast %217 : vector<1xf32> to vector<1x1x1x1xf32>
    %219 = vector.extract %218[0, 0, 0, 0] : f32 from vector<1x1x1x1xf32>
    %cst_38 = arith.constant 4.8828125E-4 : f32
    %220 = arith.mulf %219, %cst_38 : f32
    %221 = arith.mulf %74, %74 : vector<2x8x128xf32>
    %222 = vector.shape_cast %221 : vector<2x8x128xf32> to vector<1x2x8x128xf32>
    %cst_39 = arith.constant dense<0.000000e+00> : vector<1xf32>
    %223 = vector.multi_reduction <add>, %222, %cst_39 [1, 2, 3] : vector<1x2x8x128xf32> to vector<1xf32>
    %224 = vector.shape_cast %223 : vector<1xf32> to vector<1x1x1x1xf32>
    %225 = vector.extract %224[0, 0, 0, 0] : f32 from vector<1x1x1x1xf32>
    %cst_40 = arith.constant 4.8828125E-4 : f32
    %226 = arith.mulf %225, %cst_40 : f32
    %227 = arith.mulf %220, %220 : f32
    %228 = arith.subf %226, %227 : f32
    %cst_41 = arith.constant 0.000000e+00 : f32
    %229 = arith.maximumf %228, %cst_41 : f32
    %cst_42 = arith.constant 9.99999974E-6 : f32
    %230 = arith.addf %229, %cst_42 : f32
    %231 = math.rsqrt %230 : f32
    %232 = vector.broadcast %220 : f32 to vector<2x8x128xf32>
    %233 = arith.subf %74, %232 : vector<2x8x128xf32>
    %c0_43 = arith.constant 0 : index
    %234 = memref.load %arg4[%c0_43] : memref<4xf32, #tpu.memory_space<smem>>
    %235 = arith.mulf %231, %234 : f32
    %236 = vector.broadcast %235 : f32 to vector<2x8x128xf32>
    %237 = arith.mulf %233, %236 : vector<2x8x128xf32>
    %c0_44 = arith.constant 0 : index
    %238 = memref.load %arg5[%c0_44] : memref<4xf32, #tpu.memory_space<smem>>
    %239 = vector.broadcast %238 : f32 to vector<2x8x128xf32>
    %240 = arith.addf %237, %239 : vector<2x8x128xf32>
    %cst_45 = arith.constant 0.000000e+00 : f32
    %241 = vector.broadcast %cst_45 : f32 to vector<2x8x128xf32>
    %242 = arith.maximumf %240, %241 : vector<2x8x128xf32>
    %243 = vector.shape_cast %121 : vector<2x8x128xf32> to vector<1x2x8x128xf32>
    %cst_46 = arith.constant dense<0.000000e+00> : vector<1xf32>
    %244 = vector.multi_reduction <add>, %243, %cst_46 [1, 2, 3] : vector<1x2x8x128xf32> to vector<1xf32>
    %245 = vector.shape_cast %244 : vector<1xf32> to vector<1x1x1x1xf32>
    %246 = vector.extract %245[0, 0, 0, 0] : f32 from vector<1x1x1x1xf32>
    %cst_47 = arith.constant 4.8828125E-4 : f32
    %247 = arith.mulf %246, %cst_47 : f32
    %248 = arith.mulf %121, %121 : vector<2x8x128xf32>
    %249 = vector.shape_cast %248 : vector<2x8x128xf32> to vector<1x2x8x128xf32>
    %cst_48 = arith.constant dense<0.000000e+00> : vector<1xf32>
    %250 = vector.multi_reduction <add>, %249, %cst_48 [1, 2, 3] : vector<1x2x8x128xf32> to vector<1xf32>
    %251 = vector.shape_cast %250 : vector<1xf32> to vector<1x1x1x1xf32>
    %252 = vector.extract %251[0, 0, 0, 0] : f32 from vector<1x1x1x1xf32>
    %cst_49 = arith.constant 4.8828125E-4 : f32
    %253 = arith.mulf %252, %cst_49 : f32
    %254 = arith.mulf %247, %247 : f32
    %255 = arith.subf %253, %254 : f32
    %cst_50 = arith.constant 0.000000e+00 : f32
    %256 = arith.maximumf %255, %cst_50 : f32
    %cst_51 = arith.constant 9.99999974E-6 : f32
    %257 = arith.addf %256, %cst_51 : f32
    %258 = math.rsqrt %257 : f32
    %259 = vector.broadcast %247 : f32 to vector<2x8x128xf32>
    %260 = arith.subf %121, %259 : vector<2x8x128xf32>
    %c1_52 = arith.constant 1 : index
    %261 = memref.load %arg4[%c1_52] : memref<4xf32, #tpu.memory_space<smem>>
    %262 = arith.mulf %258, %261 : f32
    %263 = vector.broadcast %262 : f32 to vector<2x8x128xf32>
    %264 = arith.mulf %260, %263 : vector<2x8x128xf32>
    %c1_53 = arith.constant 1 : index
    %265 = memref.load %arg5[%c1_53] : memref<4xf32, #tpu.memory_space<smem>>
    %266 = vector.broadcast %265 : f32 to vector<2x8x128xf32>
    %267 = arith.addf %264, %266 : vector<2x8x128xf32>
    %cst_54 = arith.constant 0.000000e+00 : f32
    %268 = vector.broadcast %cst_54 : f32 to vector<2x8x128xf32>
    %269 = arith.maximumf %267, %268 : vector<2x8x128xf32>
    %270 = vector.shape_cast %168 : vector<2x8x128xf32> to vector<1x2x8x128xf32>
    %cst_55 = arith.constant dense<0.000000e+00> : vector<1xf32>
    %271 = vector.multi_reduction <add>, %270, %cst_55 [1, 2, 3] : vector<1x2x8x128xf32> to vector<1xf32>
    %272 = vector.shape_cast %271 : vector<1xf32> to vector<1x1x1x1xf32>
    %273 = vector.extract %272[0, 0, 0, 0] : f32 from vector<1x1x1x1xf32>
    %cst_56 = arith.constant 4.8828125E-4 : f32
    %274 = arith.mulf %273, %cst_56 : f32
    %275 = arith.mulf %168, %168 : vector<2x8x128xf32>
    %276 = vector.shape_cast %275 : vector<2x8x128xf32> to vector<1x2x8x128xf32>
    %cst_57 = arith.constant dense<0.000000e+00> : vector<1xf32>
    %277 = vector.multi_reduction <add>, %276, %cst_57 [1, 2, 3] : vector<1x2x8x128xf32> to vector<1xf32>
    %278 = vector.shape_cast %277 : vector<1xf32> to vector<1x1x1x1xf32>
    %279 = vector.extract %278[0, 0, 0, 0] : f32 from vector<1x1x1x1xf32>
    %cst_58 = arith.constant 4.8828125E-4 : f32
    %280 = arith.mulf %279, %cst_58 : f32
    %281 = arith.mulf %274, %274 : f32
    %282 = arith.subf %280, %281 : f32
    %cst_59 = arith.constant 0.000000e+00 : f32
    %283 = arith.maximumf %282, %cst_59 : f32
    %cst_60 = arith.constant 9.99999974E-6 : f32
    %284 = arith.addf %283, %cst_60 : f32
    %285 = math.rsqrt %284 : f32
    %286 = vector.broadcast %274 : f32 to vector<2x8x128xf32>
    %287 = arith.subf %168, %286 : vector<2x8x128xf32>
    %c2_61 = arith.constant 2 : index
    %288 = memref.load %arg4[%c2_61] : memref<4xf32, #tpu.memory_space<smem>>
    %289 = arith.mulf %285, %288 : f32
    %290 = vector.broadcast %289 : f32 to vector<2x8x128xf32>
    %291 = arith.mulf %287, %290 : vector<2x8x128xf32>
    %c2_62 = arith.constant 2 : index
    %292 = memref.load %arg5[%c2_62] : memref<4xf32, #tpu.memory_space<smem>>
    %293 = vector.broadcast %292 : f32 to vector<2x8x128xf32>
    %294 = arith.addf %291, %293 : vector<2x8x128xf32>
    %cst_63 = arith.constant 0.000000e+00 : f32
    %295 = vector.broadcast %cst_63 : f32 to vector<2x8x128xf32>
    %296 = arith.maximumf %294, %295 : vector<2x8x128xf32>
    %297 = vector.shape_cast %215 : vector<2x8x128xf32> to vector<1x2x8x128xf32>
    %cst_64 = arith.constant dense<0.000000e+00> : vector<1xf32>
    %298 = vector.multi_reduction <add>, %297, %cst_64 [1, 2, 3] : vector<1x2x8x128xf32> to vector<1xf32>
    %299 = vector.shape_cast %298 : vector<1xf32> to vector<1x1x1x1xf32>
    %300 = vector.extract %299[0, 0, 0, 0] : f32 from vector<1x1x1x1xf32>
    %cst_65 = arith.constant 4.8828125E-4 : f32
    %301 = arith.mulf %300, %cst_65 : f32
    %302 = arith.mulf %215, %215 : vector<2x8x128xf32>
    %303 = vector.shape_cast %302 : vector<2x8x128xf32> to vector<1x2x8x128xf32>
    %cst_66 = arith.constant dense<0.000000e+00> : vector<1xf32>
    %304 = vector.multi_reduction <add>, %303, %cst_66 [1, 2, 3] : vector<1x2x8x128xf32> to vector<1xf32>
    %305 = vector.shape_cast %304 : vector<1xf32> to vector<1x1x1x1xf32>
    %306 = vector.extract %305[0, 0, 0, 0] : f32 from vector<1x1x1x1xf32>
    %cst_67 = arith.constant 4.8828125E-4 : f32
    %307 = arith.mulf %306, %cst_67 : f32
    %308 = arith.mulf %301, %301 : f32
    %309 = arith.subf %307, %308 : f32
    %cst_68 = arith.constant 0.000000e+00 : f32
    %310 = arith.maximumf %309, %cst_68 : f32
    %cst_69 = arith.constant 9.99999974E-6 : f32
    %311 = arith.addf %310, %cst_69 : f32
    %312 = math.rsqrt %311 : f32
    %313 = vector.broadcast %301 : f32 to vector<2x8x128xf32>
    %314 = arith.subf %215, %313 : vector<2x8x128xf32>
    %c3_70 = arith.constant 3 : index
    %315 = memref.load %arg4[%c3_70] : memref<4xf32, #tpu.memory_space<smem>>
    %316 = arith.mulf %312, %315 : f32
    %317 = vector.broadcast %316 : f32 to vector<2x8x128xf32>
    %318 = arith.mulf %314, %317 : vector<2x8x128xf32>
    %c3_71 = arith.constant 3 : index
    %319 = memref.load %arg5[%c3_71] : memref<4xf32, #tpu.memory_space<smem>>
    %320 = vector.broadcast %319 : f32 to vector<2x8x128xf32>
    %321 = arith.addf %318, %320 : vector<2x8x128xf32>
    %cst_72 = arith.constant 0.000000e+00 : f32
    %322 = vector.broadcast %cst_72 : f32 to vector<2x8x128xf32>
    %323 = arith.maximumf %321, %322 : vector<2x8x128xf32>
    %c0_73 = arith.constant 0 : index
    %c0_74 = arith.constant 0 : index
    %c0_75 = arith.constant 0 : index
    %c0_76 = arith.constant 0 : index
    %324 = vector.load %arg2[%c0_73, %c0_74, %c0_75, %c0_76] : memref<2x4x8x128xf32, #tpu.memory_space<vmem>>, vector<2x1x8x128xf32>
    %325 = vector.shape_cast %324 : vector<2x1x8x128xf32> to vector<2x8x128xf32>
    %326 = arith.addf %242, %325 : vector<2x8x128xf32>
    %c0_77 = arith.constant 0 : index
    %c1_78 = arith.constant 1 : index
    %c0_79 = arith.constant 0 : index
    %c0_80 = arith.constant 0 : index
    %327 = vector.load %arg2[%c0_77, %c1_78, %c0_79, %c0_80] : memref<2x4x8x128xf32, #tpu.memory_space<vmem>>, vector<2x1x8x128xf32>
    %328 = vector.shape_cast %327 : vector<2x1x8x128xf32> to vector<2x8x128xf32>
    %329 = arith.addf %269, %328 : vector<2x8x128xf32>
    %c0_81 = arith.constant 0 : index
    %c2_82 = arith.constant 2 : index
    %c0_83 = arith.constant 0 : index
    %c0_84 = arith.constant 0 : index
    %330 = vector.load %arg2[%c0_81, %c2_82, %c0_83, %c0_84] : memref<2x4x8x128xf32, #tpu.memory_space<vmem>>, vector<2x1x8x128xf32>
    %331 = vector.shape_cast %330 : vector<2x1x8x128xf32> to vector<2x8x128xf32>
    %332 = arith.addf %296, %331 : vector<2x8x128xf32>
    %c0_85 = arith.constant 0 : index
    %c3_86 = arith.constant 3 : index
    %c0_87 = arith.constant 0 : index
    %c0_88 = arith.constant 0 : index
    %333 = vector.load %arg2[%c0_85, %c3_86, %c0_87, %c0_88] : memref<2x4x8x128xf32, #tpu.memory_space<vmem>>, vector<2x1x8x128xf32>
    %334 = vector.shape_cast %333 : vector<2x1x8x128xf32> to vector<2x8x128xf32>
    %335 = arith.addf %323, %334 : vector<2x8x128xf32>
    %c1_i32_89 = arith.constant 1 : i32
    %336 = tpu.dynamic_rotate %326 by %c1_i32_89 dim 2 : vector<2x8x128xf32>, i32 -> vector<2x8x128xf32>
    %c127_i32_90 = arith.constant 127 : i32
    %337 = tpu.dynamic_rotate %326 by %c127_i32_90 dim 2 : vector<2x8x128xf32>, i32 -> vector<2x8x128xf32>
    %c1_i32_91 = arith.constant 1 : i32
    %338 = tpu.dynamic_rotate %329 by %c1_i32_91 dim 2 : vector<2x8x128xf32>, i32 -> vector<2x8x128xf32>
    %c127_i32_92 = arith.constant 127 : i32
    %339 = tpu.dynamic_rotate %329 by %c127_i32_92 dim 2 : vector<2x8x128xf32>, i32 -> vector<2x8x128xf32>
    %c1_i32_93 = arith.constant 1 : i32
    %340 = tpu.dynamic_rotate %332 by %c1_i32_93 dim 2 : vector<2x8x128xf32>, i32 -> vector<2x8x128xf32>
    %c127_i32_94 = arith.constant 127 : i32
    %341 = tpu.dynamic_rotate %332 by %c127_i32_94 dim 2 : vector<2x8x128xf32>, i32 -> vector<2x8x128xf32>
    %c1_i32_95 = arith.constant 1 : i32
    %342 = tpu.dynamic_rotate %335 by %c1_i32_95 dim 2 : vector<2x8x128xf32>, i32 -> vector<2x8x128xf32>
    %c127_i32_96 = arith.constant 127 : i32
    %343 = tpu.dynamic_rotate %335 by %c127_i32_96 dim 2 : vector<2x8x128xf32>, i32 -> vector<2x8x128xf32>
    %c0_97 = arith.constant 0 : index
    %344 = memref.load %arg6[%c0_97] : memref<48xf32, #tpu.memory_space<smem>>
    %345 = vector.broadcast %344 : f32 to vector<2x8x128xf32>
    %346 = arith.mulf %345, %336 : vector<2x8x128xf32>
    %c1_98 = arith.constant 1 : index
    %347 = memref.load %arg6[%c1_98] : memref<48xf32, #tpu.memory_space<smem>>
    %348 = vector.broadcast %347 : f32 to vector<2x8x128xf32>
    %349 = arith.mulf %348, %326 : vector<2x8x128xf32>
    %350 = arith.addf %346, %349 : vector<2x8x128xf32>
    %c2_99 = arith.constant 2 : index
    %351 = memref.load %arg6[%c2_99] : memref<48xf32, #tpu.memory_space<smem>>
    %352 = vector.broadcast %351 : f32 to vector<2x8x128xf32>
    %353 = arith.mulf %352, %337 : vector<2x8x128xf32>
    %354 = arith.addf %350, %353 : vector<2x8x128xf32>
    %c3_100 = arith.constant 3 : index
    %355 = memref.load %arg6[%c3_100] : memref<48xf32, #tpu.memory_space<smem>>
    %356 = vector.broadcast %355 : f32 to vector<2x8x128xf32>
    %357 = arith.mulf %356, %338 : vector<2x8x128xf32>
    %358 = arith.addf %354, %357 : vector<2x8x128xf32>
    %c4_101 = arith.constant 4 : index
    %359 = memref.load %arg6[%c4_101] : memref<48xf32, #tpu.memory_space<smem>>
    %360 = vector.broadcast %359 : f32 to vector<2x8x128xf32>
    %361 = arith.mulf %360, %329 : vector<2x8x128xf32>
    %362 = arith.addf %358, %361 : vector<2x8x128xf32>
    %c5_102 = arith.constant 5 : index
    %363 = memref.load %arg6[%c5_102] : memref<48xf32, #tpu.memory_space<smem>>
    %364 = vector.broadcast %363 : f32 to vector<2x8x128xf32>
    %365 = arith.mulf %364, %339 : vector<2x8x128xf32>
    %366 = arith.addf %362, %365 : vector<2x8x128xf32>
    %c6_103 = arith.constant 6 : index
    %367 = memref.load %arg6[%c6_103] : memref<48xf32, #tpu.memory_space<smem>>
    %368 = vector.broadcast %367 : f32 to vector<2x8x128xf32>
    %369 = arith.mulf %368, %340 : vector<2x8x128xf32>
    %370 = arith.addf %366, %369 : vector<2x8x128xf32>
    %c7_104 = arith.constant 7 : index
    %371 = memref.load %arg6[%c7_104] : memref<48xf32, #tpu.memory_space<smem>>
    %372 = vector.broadcast %371 : f32 to vector<2x8x128xf32>
    %373 = arith.mulf %372, %332 : vector<2x8x128xf32>
    %374 = arith.addf %370, %373 : vector<2x8x128xf32>
    %c8_105 = arith.constant 8 : index
    %375 = memref.load %arg6[%c8_105] : memref<48xf32, #tpu.memory_space<smem>>
    %376 = vector.broadcast %375 : f32 to vector<2x8x128xf32>
    %377 = arith.mulf %376, %341 : vector<2x8x128xf32>
    %378 = arith.addf %374, %377 : vector<2x8x128xf32>
    %c9_106 = arith.constant 9 : index
    %379 = memref.load %arg6[%c9_106] : memref<48xf32, #tpu.memory_space<smem>>
    %380 = vector.broadcast %379 : f32 to vector<2x8x128xf32>
    %381 = arith.mulf %380, %342 : vector<2x8x128xf32>
    %382 = arith.addf %378, %381 : vector<2x8x128xf32>
    %c10_107 = arith.constant 10 : index
    %383 = memref.load %arg6[%c10_107] : memref<48xf32, #tpu.memory_space<smem>>
    %384 = vector.broadcast %383 : f32 to vector<2x8x128xf32>
    %385 = arith.mulf %384, %335 : vector<2x8x128xf32>
    %386 = arith.addf %382, %385 : vector<2x8x128xf32>
    %c11_108 = arith.constant 11 : index
    %387 = memref.load %arg6[%c11_108] : memref<48xf32, #tpu.memory_space<smem>>
    %388 = vector.broadcast %387 : f32 to vector<2x8x128xf32>
    %389 = arith.mulf %388, %343 : vector<2x8x128xf32>
    %390 = arith.addf %386, %389 : vector<2x8x128xf32>
    %c12_109 = arith.constant 12 : index
    %391 = memref.load %arg6[%c12_109] : memref<48xf32, #tpu.memory_space<smem>>
    %392 = vector.broadcast %391 : f32 to vector<2x8x128xf32>
    %393 = arith.mulf %392, %336 : vector<2x8x128xf32>
    %c13_110 = arith.constant 13 : index
    %394 = memref.load %arg6[%c13_110] : memref<48xf32, #tpu.memory_space<smem>>
    %395 = vector.broadcast %394 : f32 to vector<2x8x128xf32>
    %396 = arith.mulf %395, %326 : vector<2x8x128xf32>
    %397 = arith.addf %393, %396 : vector<2x8x128xf32>
    %c14_111 = arith.constant 14 : index
    %398 = memref.load %arg6[%c14_111] : memref<48xf32, #tpu.memory_space<smem>>
    %399 = vector.broadcast %398 : f32 to vector<2x8x128xf32>
    %400 = arith.mulf %399, %337 : vector<2x8x128xf32>
    %401 = arith.addf %397, %400 : vector<2x8x128xf32>
    %c15_112 = arith.constant 15 : index
    %402 = memref.load %arg6[%c15_112] : memref<48xf32, #tpu.memory_space<smem>>
    %403 = vector.broadcast %402 : f32 to vector<2x8x128xf32>
    %404 = arith.mulf %403, %338 : vector<2x8x128xf32>
    %405 = arith.addf %401, %404 : vector<2x8x128xf32>
    %c16_113 = arith.constant 16 : index
    %406 = memref.load %arg6[%c16_113] : memref<48xf32, #tpu.memory_space<smem>>
    %407 = vector.broadcast %406 : f32 to vector<2x8x128xf32>
    %408 = arith.mulf %407, %329 : vector<2x8x128xf32>
    %409 = arith.addf %405, %408 : vector<2x8x128xf32>
    %c17_114 = arith.constant 17 : index
    %410 = memref.load %arg6[%c17_114] : memref<48xf32, #tpu.memory_space<smem>>
    %411 = vector.broadcast %410 : f32 to vector<2x8x128xf32>
    %412 = arith.mulf %411, %339 : vector<2x8x128xf32>
    %413 = arith.addf %409, %412 : vector<2x8x128xf32>
    %c18_115 = arith.constant 18 : index
    %414 = memref.load %arg6[%c18_115] : memref<48xf32, #tpu.memory_space<smem>>
    %415 = vector.broadcast %414 : f32 to vector<2x8x128xf32>
    %416 = arith.mulf %415, %340 : vector<2x8x128xf32>
    %417 = arith.addf %413, %416 : vector<2x8x128xf32>
    %c19_116 = arith.constant 19 : index
    %418 = memref.load %arg6[%c19_116] : memref<48xf32, #tpu.memory_space<smem>>
    %419 = vector.broadcast %418 : f32 to vector<2x8x128xf32>
    %420 = arith.mulf %419, %332 : vector<2x8x128xf32>
    %421 = arith.addf %417, %420 : vector<2x8x128xf32>
    %c20_117 = arith.constant 20 : index
    %422 = memref.load %arg6[%c20_117] : memref<48xf32, #tpu.memory_space<smem>>
    %423 = vector.broadcast %422 : f32 to vector<2x8x128xf32>
    %424 = arith.mulf %423, %341 : vector<2x8x128xf32>
    %425 = arith.addf %421, %424 : vector<2x8x128xf32>
    %c21_118 = arith.constant 21 : index
    %426 = memref.load %arg6[%c21_118] : memref<48xf32, #tpu.memory_space<smem>>
    %427 = vector.broadcast %426 : f32 to vector<2x8x128xf32>
    %428 = arith.mulf %427, %342 : vector<2x8x128xf32>
    %429 = arith.addf %425, %428 : vector<2x8x128xf32>
    %c22_119 = arith.constant 22 : index
    %430 = memref.load %arg6[%c22_119] : memref<48xf32, #tpu.memory_space<smem>>
    %431 = vector.broadcast %430 : f32 to vector<2x8x128xf32>
    %432 = arith.mulf %431, %335 : vector<2x8x128xf32>
    %433 = arith.addf %429, %432 : vector<2x8x128xf32>
    %c23_120 = arith.constant 23 : index
    %434 = memref.load %arg6[%c23_120] : memref<48xf32, #tpu.memory_space<smem>>
    %435 = vector.broadcast %434 : f32 to vector<2x8x128xf32>
    %436 = arith.mulf %435, %343 : vector<2x8x128xf32>
    %437 = arith.addf %433, %436 : vector<2x8x128xf32>
    %c24_121 = arith.constant 24 : index
    %438 = memref.load %arg6[%c24_121] : memref<48xf32, #tpu.memory_space<smem>>
    %439 = vector.broadcast %438 : f32 to vector<2x8x128xf32>
    %440 = arith.mulf %439, %336 : vector<2x8x128xf32>
    %c25_122 = arith.constant 25 : index
    %441 = memref.load %arg6[%c25_122] : memref<48xf32, #tpu.memory_space<smem>>
    %442 = vector.broadcast %441 : f32 to vector<2x8x128xf32>
    %443 = arith.mulf %442, %326 : vector<2x8x128xf32>
    %444 = arith.addf %440, %443 : vector<2x8x128xf32>
    %c26_123 = arith.constant 26 : index
    %445 = memref.load %arg6[%c26_123] : memref<48xf32, #tpu.memory_space<smem>>
    %446 = vector.broadcast %445 : f32 to vector<2x8x128xf32>
    %447 = arith.mulf %446, %337 : vector<2x8x128xf32>
    %448 = arith.addf %444, %447 : vector<2x8x128xf32>
    %c27_124 = arith.constant 27 : index
    %449 = memref.load %arg6[%c27_124] : memref<48xf32, #tpu.memory_space<smem>>
    %450 = vector.broadcast %449 : f32 to vector<2x8x128xf32>
    %451 = arith.mulf %450, %338 : vector<2x8x128xf32>
    %452 = arith.addf %448, %451 : vector<2x8x128xf32>
    %c28_125 = arith.constant 28 : index
    %453 = memref.load %arg6[%c28_125] : memref<48xf32, #tpu.memory_space<smem>>
    %454 = vector.broadcast %453 : f32 to vector<2x8x128xf32>
    %455 = arith.mulf %454, %329 : vector<2x8x128xf32>
    %456 = arith.addf %452, %455 : vector<2x8x128xf32>
    %c29_126 = arith.constant 29 : index
    %457 = memref.load %arg6[%c29_126] : memref<48xf32, #tpu.memory_space<smem>>
    %458 = vector.broadcast %457 : f32 to vector<2x8x128xf32>
    %459 = arith.mulf %458, %339 : vector<2x8x128xf32>
    %460 = arith.addf %456, %459 : vector<2x8x128xf32>
    %c30_127 = arith.constant 30 : index
    %461 = memref.load %arg6[%c30_127] : memref<48xf32, #tpu.memory_space<smem>>
    %462 = vector.broadcast %461 : f32 to vector<2x8x128xf32>
    %463 = arith.mulf %462, %340 : vector<2x8x128xf32>
    %464 = arith.addf %460, %463 : vector<2x8x128xf32>
    %c31_128 = arith.constant 31 : index
    %465 = memref.load %arg6[%c31_128] : memref<48xf32, #tpu.memory_space<smem>>
    %466 = vector.broadcast %465 : f32 to vector<2x8x128xf32>
    %467 = arith.mulf %466, %332 : vector<2x8x128xf32>
    %468 = arith.addf %464, %467 : vector<2x8x128xf32>
    %c32_129 = arith.constant 32 : index
    %469 = memref.load %arg6[%c32_129] : memref<48xf32, #tpu.memory_space<smem>>
    %470 = vector.broadcast %469 : f32 to vector<2x8x128xf32>
    %471 = arith.mulf %470, %341 : vector<2x8x128xf32>
    %472 = arith.addf %468, %471 : vector<2x8x128xf32>
    %c33_130 = arith.constant 33 : index
    %473 = memref.load %arg6[%c33_130] : memref<48xf32, #tpu.memory_space<smem>>
    %474 = vector.broadcast %473 : f32 to vector<2x8x128xf32>
    %475 = arith.mulf %474, %342 : vector<2x8x128xf32>
    %476 = arith.addf %472, %475 : vector<2x8x128xf32>
    %c34_131 = arith.constant 34 : index
    %477 = memref.load %arg6[%c34_131] : memref<48xf32, #tpu.memory_space<smem>>
    %478 = vector.broadcast %477 : f32 to vector<2x8x128xf32>
    %479 = arith.mulf %478, %335 : vector<2x8x128xf32>
    %480 = arith.addf %476, %479 : vector<2x8x128xf32>
    %c35_132 = arith.constant 35 : index
    %481 = memref.load %arg6[%c35_132] : memref<48xf32, #tpu.memory_space<smem>>
    %482 = vector.broadcast %481 : f32 to vector<2x8x128xf32>
    %483 = arith.mulf %482, %343 : vector<2x8x128xf32>
    %484 = arith.addf %480, %483 : vector<2x8x128xf32>
    %c36_133 = arith.constant 36 : index
    %485 = memref.load %arg6[%c36_133] : memref<48xf32, #tpu.memory_space<smem>>
    %486 = vector.broadcast %485 : f32 to vector<2x8x128xf32>
    %487 = arith.mulf %486, %336 : vector<2x8x128xf32>
    %c37_134 = arith.constant 37 : index
    %488 = memref.load %arg6[%c37_134] : memref<48xf32, #tpu.memory_space<smem>>
    %489 = vector.broadcast %488 : f32 to vector<2x8x128xf32>
    %490 = arith.mulf %489, %326 : vector<2x8x128xf32>
    %491 = arith.addf %487, %490 : vector<2x8x128xf32>
    %c38_135 = arith.constant 38 : index
    %492 = memref.load %arg6[%c38_135] : memref<48xf32, #tpu.memory_space<smem>>
    %493 = vector.broadcast %492 : f32 to vector<2x8x128xf32>
    %494 = arith.mulf %493, %337 : vector<2x8x128xf32>
    %495 = arith.addf %491, %494 : vector<2x8x128xf32>
    %c39_136 = arith.constant 39 : index
    %496 = memref.load %arg6[%c39_136] : memref<48xf32, #tpu.memory_space<smem>>
    %497 = vector.broadcast %496 : f32 to vector<2x8x128xf32>
    %498 = arith.mulf %497, %338 : vector<2x8x128xf32>
    %499 = arith.addf %495, %498 : vector<2x8x128xf32>
    %c40_137 = arith.constant 40 : index
    %500 = memref.load %arg6[%c40_137] : memref<48xf32, #tpu.memory_space<smem>>
    %501 = vector.broadcast %500 : f32 to vector<2x8x128xf32>
    %502 = arith.mulf %501, %329 : vector<2x8x128xf32>
    %503 = arith.addf %499, %502 : vector<2x8x128xf32>
    %c41_138 = arith.constant 41 : index
    %504 = memref.load %arg6[%c41_138] : memref<48xf32, #tpu.memory_space<smem>>
    %505 = vector.broadcast %504 : f32 to vector<2x8x128xf32>
    %506 = arith.mulf %505, %339 : vector<2x8x128xf32>
    %507 = arith.addf %503, %506 : vector<2x8x128xf32>
    %c42_139 = arith.constant 42 : index
    %508 = memref.load %arg6[%c42_139] : memref<48xf32, #tpu.memory_space<smem>>
    %509 = vector.broadcast %508 : f32 to vector<2x8x128xf32>
    %510 = arith.mulf %509, %340 : vector<2x8x128xf32>
    %511 = arith.addf %507, %510 : vector<2x8x128xf32>
    %c43_140 = arith.constant 43 : index
    %512 = memref.load %arg6[%c43_140] : memref<48xf32, #tpu.memory_space<smem>>
    %513 = vector.broadcast %512 : f32 to vector<2x8x128xf32>
    %514 = arith.mulf %513, %332 : vector<2x8x128xf32>
    %515 = arith.addf %511, %514 : vector<2x8x128xf32>
    %c44_141 = arith.constant 44 : index
    %516 = memref.load %arg6[%c44_141] : memref<48xf32, #tpu.memory_space<smem>>
    %517 = vector.broadcast %516 : f32 to vector<2x8x128xf32>
    %518 = arith.mulf %517, %341 : vector<2x8x128xf32>
    %519 = arith.addf %515, %518 : vector<2x8x128xf32>
    %c45_142 = arith.constant 45 : index
    %520 = memref.load %arg6[%c45_142] : memref<48xf32, #tpu.memory_space<smem>>
    %521 = vector.broadcast %520 : f32 to vector<2x8x128xf32>
    %522 = arith.mulf %521, %342 : vector<2x8x128xf32>
    %523 = arith.addf %519, %522 : vector<2x8x128xf32>
    %c46_143 = arith.constant 46 : index
    %524 = memref.load %arg6[%c46_143] : memref<48xf32, #tpu.memory_space<smem>>
    %525 = vector.broadcast %524 : f32 to vector<2x8x128xf32>
    %526 = arith.mulf %525, %335 : vector<2x8x128xf32>
    %527 = arith.addf %523, %526 : vector<2x8x128xf32>
    %c47_144 = arith.constant 47 : index
    %528 = memref.load %arg6[%c47_144] : memref<48xf32, #tpu.memory_space<smem>>
    %529 = vector.broadcast %528 : f32 to vector<2x8x128xf32>
    %530 = arith.mulf %529, %343 : vector<2x8x128xf32>
    %531 = arith.addf %527, %530 : vector<2x8x128xf32>
    %532 = vector.shape_cast %390 : vector<2x8x128xf32> to vector<1x2x8x128xf32>
    %cst_145 = arith.constant dense<0.000000e+00> : vector<1xf32>
    %533 = vector.multi_reduction <add>, %532, %cst_145 [1, 2, 3] : vector<1x2x8x128xf32> to vector<1xf32>
    %534 = vector.shape_cast %533 : vector<1xf32> to vector<1x1x1x1xf32>
    %535 = vector.extract %534[0, 0, 0, 0] : f32 from vector<1x1x1x1xf32>
    %cst_146 = arith.constant 4.8828125E-4 : f32
    %536 = arith.mulf %535, %cst_146 : f32
    %537 = arith.mulf %390, %390 : vector<2x8x128xf32>
    %538 = vector.shape_cast %537 : vector<2x8x128xf32> to vector<1x2x8x128xf32>
    %cst_147 = arith.constant dense<0.000000e+00> : vector<1xf32>
    %539 = vector.multi_reduction <add>, %538, %cst_147 [1, 2, 3] : vector<1x2x8x128xf32> to vector<1xf32>
    %540 = vector.shape_cast %539 : vector<1xf32> to vector<1x1x1x1xf32>
    %541 = vector.extract %540[0, 0, 0, 0] : f32 from vector<1x1x1x1xf32>
    %cst_148 = arith.constant 4.8828125E-4 : f32
    %542 = arith.mulf %541, %cst_148 : f32
    %543 = arith.mulf %536, %536 : f32
    %544 = arith.subf %542, %543 : f32
    %cst_149 = arith.constant 0.000000e+00 : f32
    %545 = arith.maximumf %544, %cst_149 : f32
    %cst_150 = arith.constant 9.99999974E-6 : f32
    %546 = arith.addf %545, %cst_150 : f32
    %547 = math.rsqrt %546 : f32
    %548 = vector.broadcast %536 : f32 to vector<2x8x128xf32>
    %549 = arith.subf %390, %548 : vector<2x8x128xf32>
    %c0_151 = arith.constant 0 : index
    %550 = memref.load %arg7[%c0_151] : memref<4xf32, #tpu.memory_space<smem>>
    %551 = arith.mulf %547, %550 : f32
    %552 = vector.broadcast %551 : f32 to vector<2x8x128xf32>
    %553 = arith.mulf %549, %552 : vector<2x8x128xf32>
    %c0_152 = arith.constant 0 : index
    %554 = memref.load %arg8[%c0_152] : memref<4xf32, #tpu.memory_space<smem>>
    %555 = vector.broadcast %554 : f32 to vector<2x8x128xf32>
    %556 = arith.addf %553, %555 : vector<2x8x128xf32>
    %cst_153 = arith.constant 0.000000e+00 : f32
    %557 = vector.broadcast %cst_153 : f32 to vector<2x8x128xf32>
    %558 = arith.maximumf %556, %557 : vector<2x8x128xf32>
    %559 = vector.shape_cast %437 : vector<2x8x128xf32> to vector<1x2x8x128xf32>
    %cst_154 = arith.constant dense<0.000000e+00> : vector<1xf32>
    %560 = vector.multi_reduction <add>, %559, %cst_154 [1, 2, 3] : vector<1x2x8x128xf32> to vector<1xf32>
    %561 = vector.shape_cast %560 : vector<1xf32> to vector<1x1x1x1xf32>
    %562 = vector.extract %561[0, 0, 0, 0] : f32 from vector<1x1x1x1xf32>
    %cst_155 = arith.constant 4.8828125E-4 : f32
    %563 = arith.mulf %562, %cst_155 : f32
    %564 = arith.mulf %437, %437 : vector<2x8x128xf32>
    %565 = vector.shape_cast %564 : vector<2x8x128xf32> to vector<1x2x8x128xf32>
    %cst_156 = arith.constant dense<0.000000e+00> : vector<1xf32>
    %566 = vector.multi_reduction <add>, %565, %cst_156 [1, 2, 3] : vector<1x2x8x128xf32> to vector<1xf32>
    %567 = vector.shape_cast %566 : vector<1xf32> to vector<1x1x1x1xf32>
    %568 = vector.extract %567[0, 0, 0, 0] : f32 from vector<1x1x1x1xf32>
    %cst_157 = arith.constant 4.8828125E-4 : f32
    %569 = arith.mulf %568, %cst_157 : f32
    %570 = arith.mulf %563, %563 : f32
    %571 = arith.subf %569, %570 : f32
    %cst_158 = arith.constant 0.000000e+00 : f32
    %572 = arith.maximumf %571, %cst_158 : f32
    %cst_159 = arith.constant 9.99999974E-6 : f32
    %573 = arith.addf %572, %cst_159 : f32
    %574 = math.rsqrt %573 : f32
    %575 = vector.broadcast %563 : f32 to vector<2x8x128xf32>
    %576 = arith.subf %437, %575 : vector<2x8x128xf32>
    %c1_160 = arith.constant 1 : index
    %577 = memref.load %arg7[%c1_160] : memref<4xf32, #tpu.memory_space<smem>>
    %578 = arith.mulf %574, %577 : f32
    %579 = vector.broadcast %578 : f32 to vector<2x8x128xf32>
    %580 = arith.mulf %576, %579 : vector<2x8x128xf32>
    %c1_161 = arith.constant 1 : index
    %581 = memref.load %arg8[%c1_161] : memref<4xf32, #tpu.memory_space<smem>>
    %582 = vector.broadcast %581 : f32 to vector<2x8x128xf32>
    %583 = arith.addf %580, %582 : vector<2x8x128xf32>
    %cst_162 = arith.constant 0.000000e+00 : f32
    %584 = vector.broadcast %cst_162 : f32 to vector<2x8x128xf32>
    %585 = arith.maximumf %583, %584 : vector<2x8x128xf32>
    %586 = vector.shape_cast %484 : vector<2x8x128xf32> to vector<1x2x8x128xf32>
    %cst_163 = arith.constant dense<0.000000e+00> : vector<1xf32>
    %587 = vector.multi_reduction <add>, %586, %cst_163 [1, 2, 3] : vector<1x2x8x128xf32> to vector<1xf32>
    %588 = vector.shape_cast %587 : vector<1xf32> to vector<1x1x1x1xf32>
    %589 = vector.extract %588[0, 0, 0, 0] : f32 from vector<1x1x1x1xf32>
    %cst_164 = arith.constant 4.8828125E-4 : f32
    %590 = arith.mulf %589, %cst_164 : f32
    %591 = arith.mulf %484, %484 : vector<2x8x128xf32>
    %592 = vector.shape_cast %591 : vector<2x8x128xf32> to vector<1x2x8x128xf32>
    %cst_165 = arith.constant dense<0.000000e+00> : vector<1xf32>
    %593 = vector.multi_reduction <add>, %592, %cst_165 [1, 2, 3] : vector<1x2x8x128xf32> to vector<1xf32>
    %594 = vector.shape_cast %593 : vector<1xf32> to vector<1x1x1x1xf32>
    %595 = vector.extract %594[0, 0, 0, 0] : f32 from vector<1x1x1x1xf32>
    %cst_166 = arith.constant 4.8828125E-4 : f32
    %596 = arith.mulf %595, %cst_166 : f32
    %597 = arith.mulf %590, %590 : f32
    %598 = arith.subf %596, %597 : f32
    %cst_167 = arith.constant 0.000000e+00 : f32
    %599 = arith.maximumf %598, %cst_167 : f32
    %cst_168 = arith.constant 9.99999974E-6 : f32
    %600 = arith.addf %599, %cst_168 : f32
    %601 = math.rsqrt %600 : f32
    %602 = vector.broadcast %590 : f32 to vector<2x8x128xf32>
    %603 = arith.subf %484, %602 : vector<2x8x128xf32>
    %c2_169 = arith.constant 2 : index
    %604 = memref.load %arg7[%c2_169] : memref<4xf32, #tpu.memory_space<smem>>
    %605 = arith.mulf %601, %604 : f32
    %606 = vector.broadcast %605 : f32 to vector<2x8x128xf32>
    %607 = arith.mulf %603, %606 : vector<2x8x128xf32>
    %c2_170 = arith.constant 2 : index
    %608 = memref.load %arg8[%c2_170] : memref<4xf32, #tpu.memory_space<smem>>
    %609 = vector.broadcast %608 : f32 to vector<2x8x128xf32>
    %610 = arith.addf %607, %609 : vector<2x8x128xf32>
    %cst_171 = arith.constant 0.000000e+00 : f32
    %611 = vector.broadcast %cst_171 : f32 to vector<2x8x128xf32>
    %612 = arith.maximumf %610, %611 : vector<2x8x128xf32>
    %613 = vector.shape_cast %531 : vector<2x8x128xf32> to vector<1x2x8x128xf32>
    %cst_172 = arith.constant dense<0.000000e+00> : vector<1xf32>
    %614 = vector.multi_reduction <add>, %613, %cst_172 [1, 2, 3] : vector<1x2x8x128xf32> to vector<1xf32>
    %615 = vector.shape_cast %614 : vector<1xf32> to vector<1x1x1x1xf32>
    %616 = vector.extract %615[0, 0, 0, 0] : f32 from vector<1x1x1x1xf32>
    %cst_173 = arith.constant 4.8828125E-4 : f32
    %617 = arith.mulf %616, %cst_173 : f32
    %618 = arith.mulf %531, %531 : vector<2x8x128xf32>
    %619 = vector.shape_cast %618 : vector<2x8x128xf32> to vector<1x2x8x128xf32>
    %cst_174 = arith.constant dense<0.000000e+00> : vector<1xf32>
    %620 = vector.multi_reduction <add>, %619, %cst_174 [1, 2, 3] : vector<1x2x8x128xf32> to vector<1xf32>
    %621 = vector.shape_cast %620 : vector<1xf32> to vector<1x1x1x1xf32>
    %622 = vector.extract %621[0, 0, 0, 0] : f32 from vector<1x1x1x1xf32>
    %cst_175 = arith.constant 4.8828125E-4 : f32
    %623 = arith.mulf %622, %cst_175 : f32
    %624 = arith.mulf %617, %617 : f32
    %625 = arith.subf %623, %624 : f32
    %cst_176 = arith.constant 0.000000e+00 : f32
    %626 = arith.maximumf %625, %cst_176 : f32
    %cst_177 = arith.constant 9.99999974E-6 : f32
    %627 = arith.addf %626, %cst_177 : f32
    %628 = math.rsqrt %627 : f32
    %629 = vector.broadcast %617 : f32 to vector<2x8x128xf32>
    %630 = arith.subf %531, %629 : vector<2x8x128xf32>
    %c3_178 = arith.constant 3 : index
    %631 = memref.load %arg7[%c3_178] : memref<4xf32, #tpu.memory_space<smem>>
    %632 = arith.mulf %628, %631 : f32
    %633 = vector.broadcast %632 : f32 to vector<2x8x128xf32>
    %634 = arith.mulf %630, %633 : vector<2x8x128xf32>
    %c3_179 = arith.constant 3 : index
    %635 = memref.load %arg8[%c3_179] : memref<4xf32, #tpu.memory_space<smem>>
    %636 = vector.broadcast %635 : f32 to vector<2x8x128xf32>
    %637 = arith.addf %634, %636 : vector<2x8x128xf32>
    %cst_180 = arith.constant 0.000000e+00 : f32
    %638 = vector.broadcast %cst_180 : f32 to vector<2x8x128xf32>
    %639 = arith.maximumf %637, %638 : vector<2x8x128xf32>
    %c1_i32_181 = arith.constant 1 : i32
    %640 = tpu.dynamic_rotate %558 by %c1_i32_181 dim 2 : vector<2x8x128xf32>, i32 -> vector<2x8x128xf32>
    %c127_i32_182 = arith.constant 127 : i32
    %641 = tpu.dynamic_rotate %558 by %c127_i32_182 dim 2 : vector<2x8x128xf32>, i32 -> vector<2x8x128xf32>
    %c1_i32_183 = arith.constant 1 : i32
    %642 = tpu.dynamic_rotate %585 by %c1_i32_183 dim 2 : vector<2x8x128xf32>, i32 -> vector<2x8x128xf32>
    %c127_i32_184 = arith.constant 127 : i32
    %643 = tpu.dynamic_rotate %585 by %c127_i32_184 dim 2 : vector<2x8x128xf32>, i32 -> vector<2x8x128xf32>
    %c1_i32_185 = arith.constant 1 : i32
    %644 = tpu.dynamic_rotate %612 by %c1_i32_185 dim 2 : vector<2x8x128xf32>, i32 -> vector<2x8x128xf32>
    %c127_i32_186 = arith.constant 127 : i32
    %645 = tpu.dynamic_rotate %612 by %c127_i32_186 dim 2 : vector<2x8x128xf32>, i32 -> vector<2x8x128xf32>
    %c1_i32_187 = arith.constant 1 : i32
    %646 = tpu.dynamic_rotate %639 by %c1_i32_187 dim 2 : vector<2x8x128xf32>, i32 -> vector<2x8x128xf32>
    %c127_i32_188 = arith.constant 127 : i32
    %647 = tpu.dynamic_rotate %639 by %c127_i32_188 dim 2 : vector<2x8x128xf32>, i32 -> vector<2x8x128xf32>
    %c0_189 = arith.constant 0 : index
    %648 = memref.load %arg9[%c0_189] : memref<48xf32, #tpu.memory_space<smem>>
    %649 = vector.broadcast %648 : f32 to vector<2x8x128xf32>
    %650 = arith.mulf %649, %640 : vector<2x8x128xf32>
    %c1_190 = arith.constant 1 : index
    %651 = memref.load %arg9[%c1_190] : memref<48xf32, #tpu.memory_space<smem>>
    %652 = vector.broadcast %651 : f32 to vector<2x8x128xf32>
    %653 = arith.mulf %652, %558 : vector<2x8x128xf32>
    %654 = arith.addf %650, %653 : vector<2x8x128xf32>
    %c2_191 = arith.constant 2 : index
    %655 = memref.load %arg9[%c2_191] : memref<48xf32, #tpu.memory_space<smem>>
    %656 = vector.broadcast %655 : f32 to vector<2x8x128xf32>
    %657 = arith.mulf %656, %641 : vector<2x8x128xf32>
    %658 = arith.addf %654, %657 : vector<2x8x128xf32>
    %c3_192 = arith.constant 3 : index
    %659 = memref.load %arg9[%c3_192] : memref<48xf32, #tpu.memory_space<smem>>
    %660 = vector.broadcast %659 : f32 to vector<2x8x128xf32>
    %661 = arith.mulf %660, %642 : vector<2x8x128xf32>
    %662 = arith.addf %658, %661 : vector<2x8x128xf32>
    %c4_193 = arith.constant 4 : index
    %663 = memref.load %arg9[%c4_193] : memref<48xf32, #tpu.memory_space<smem>>
    %664 = vector.broadcast %663 : f32 to vector<2x8x128xf32>
    %665 = arith.mulf %664, %585 : vector<2x8x128xf32>
    %666 = arith.addf %662, %665 : vector<2x8x128xf32>
    %c5_194 = arith.constant 5 : index
    %667 = memref.load %arg9[%c5_194] : memref<48xf32, #tpu.memory_space<smem>>
    %668 = vector.broadcast %667 : f32 to vector<2x8x128xf32>
    %669 = arith.mulf %668, %643 : vector<2x8x128xf32>
    %670 = arith.addf %666, %669 : vector<2x8x128xf32>
    %c6_195 = arith.constant 6 : index
    %671 = memref.load %arg9[%c6_195] : memref<48xf32, #tpu.memory_space<smem>>
    %672 = vector.broadcast %671 : f32 to vector<2x8x128xf32>
    %673 = arith.mulf %672, %644 : vector<2x8x128xf32>
    %674 = arith.addf %670, %673 : vector<2x8x128xf32>
    %c7_196 = arith.constant 7 : index
    %675 = memref.load %arg9[%c7_196] : memref<48xf32, #tpu.memory_space<smem>>
    %676 = vector.broadcast %675 : f32 to vector<2x8x128xf32>
    %677 = arith.mulf %676, %612 : vector<2x8x128xf32>
    %678 = arith.addf %674, %677 : vector<2x8x128xf32>
    %c8_197 = arith.constant 8 : index
    %679 = memref.load %arg9[%c8_197] : memref<48xf32, #tpu.memory_space<smem>>
    %680 = vector.broadcast %679 : f32 to vector<2x8x128xf32>
    %681 = arith.mulf %680, %645 : vector<2x8x128xf32>
    %682 = arith.addf %678, %681 : vector<2x8x128xf32>
    %c9_198 = arith.constant 9 : index
    %683 = memref.load %arg9[%c9_198] : memref<48xf32, #tpu.memory_space<smem>>
    %684 = vector.broadcast %683 : f32 to vector<2x8x128xf32>
    %685 = arith.mulf %684, %646 : vector<2x8x128xf32>
    %686 = arith.addf %682, %685 : vector<2x8x128xf32>
    %c10_199 = arith.constant 10 : index
    %687 = memref.load %arg9[%c10_199] : memref<48xf32, #tpu.memory_space<smem>>
    %688 = vector.broadcast %687 : f32 to vector<2x8x128xf32>
    %689 = arith.mulf %688, %639 : vector<2x8x128xf32>
    %690 = arith.addf %686, %689 : vector<2x8x128xf32>
    %c11_200 = arith.constant 11 : index
    %691 = memref.load %arg9[%c11_200] : memref<48xf32, #tpu.memory_space<smem>>
    %692 = vector.broadcast %691 : f32 to vector<2x8x128xf32>
    %693 = arith.mulf %692, %647 : vector<2x8x128xf32>
    %694 = arith.addf %690, %693 : vector<2x8x128xf32>
    %c12_201 = arith.constant 12 : index
    %695 = memref.load %arg9[%c12_201] : memref<48xf32, #tpu.memory_space<smem>>
    %696 = vector.broadcast %695 : f32 to vector<2x8x128xf32>
    %697 = arith.mulf %696, %640 : vector<2x8x128xf32>
    %c13_202 = arith.constant 13 : index
    %698 = memref.load %arg9[%c13_202] : memref<48xf32, #tpu.memory_space<smem>>
    %699 = vector.broadcast %698 : f32 to vector<2x8x128xf32>
    %700 = arith.mulf %699, %558 : vector<2x8x128xf32>
    %701 = arith.addf %697, %700 : vector<2x8x128xf32>
    %c14_203 = arith.constant 14 : index
    %702 = memref.load %arg9[%c14_203] : memref<48xf32, #tpu.memory_space<smem>>
    %703 = vector.broadcast %702 : f32 to vector<2x8x128xf32>
    %704 = arith.mulf %703, %641 : vector<2x8x128xf32>
    %705 = arith.addf %701, %704 : vector<2x8x128xf32>
    %c15_204 = arith.constant 15 : index
    %706 = memref.load %arg9[%c15_204] : memref<48xf32, #tpu.memory_space<smem>>
    %707 = vector.broadcast %706 : f32 to vector<2x8x128xf32>
    %708 = arith.mulf %707, %642 : vector<2x8x128xf32>
    %709 = arith.addf %705, %708 : vector<2x8x128xf32>
    %c16_205 = arith.constant 16 : index
    %710 = memref.load %arg9[%c16_205] : memref<48xf32, #tpu.memory_space<smem>>
    %711 = vector.broadcast %710 : f32 to vector<2x8x128xf32>
    %712 = arith.mulf %711, %585 : vector<2x8x128xf32>
    %713 = arith.addf %709, %712 : vector<2x8x128xf32>
    %c17_206 = arith.constant 17 : index
    %714 = memref.load %arg9[%c17_206] : memref<48xf32, #tpu.memory_space<smem>>
    %715 = vector.broadcast %714 : f32 to vector<2x8x128xf32>
    %716 = arith.mulf %715, %643 : vector<2x8x128xf32>
    %717 = arith.addf %713, %716 : vector<2x8x128xf32>
    %c18_207 = arith.constant 18 : index
    %718 = memref.load %arg9[%c18_207] : memref<48xf32, #tpu.memory_space<smem>>
    %719 = vector.broadcast %718 : f32 to vector<2x8x128xf32>
    %720 = arith.mulf %719, %644 : vector<2x8x128xf32>
    %721 = arith.addf %717, %720 : vector<2x8x128xf32>
    %c19_208 = arith.constant 19 : index
    %722 = memref.load %arg9[%c19_208] : memref<48xf32, #tpu.memory_space<smem>>
    %723 = vector.broadcast %722 : f32 to vector<2x8x128xf32>
    %724 = arith.mulf %723, %612 : vector<2x8x128xf32>
    %725 = arith.addf %721, %724 : vector<2x8x128xf32>
    %c20_209 = arith.constant 20 : index
    %726 = memref.load %arg9[%c20_209] : memref<48xf32, #tpu.memory_space<smem>>
    %727 = vector.broadcast %726 : f32 to vector<2x8x128xf32>
    %728 = arith.mulf %727, %645 : vector<2x8x128xf32>
    %729 = arith.addf %725, %728 : vector<2x8x128xf32>
    %c21_210 = arith.constant 21 : index
    %730 = memref.load %arg9[%c21_210] : memref<48xf32, #tpu.memory_space<smem>>
    %731 = vector.broadcast %730 : f32 to vector<2x8x128xf32>
    %732 = arith.mulf %731, %646 : vector<2x8x128xf32>
    %733 = arith.addf %729, %732 : vector<2x8x128xf32>
    %c22_211 = arith.constant 22 : index
    %734 = memref.load %arg9[%c22_211] : memref<48xf32, #tpu.memory_space<smem>>
    %735 = vector.broadcast %734 : f32 to vector<2x8x128xf32>
    %736 = arith.mulf %735, %639 : vector<2x8x128xf32>
    %737 = arith.addf %733, %736 : vector<2x8x128xf32>
    %c23_212 = arith.constant 23 : index
    %738 = memref.load %arg9[%c23_212] : memref<48xf32, #tpu.memory_space<smem>>
    %739 = vector.broadcast %738 : f32 to vector<2x8x128xf32>
    %740 = arith.mulf %739, %647 : vector<2x8x128xf32>
    %741 = arith.addf %737, %740 : vector<2x8x128xf32>
    %c24_213 = arith.constant 24 : index
    %742 = memref.load %arg9[%c24_213] : memref<48xf32, #tpu.memory_space<smem>>
    %743 = vector.broadcast %742 : f32 to vector<2x8x128xf32>
    %744 = arith.mulf %743, %640 : vector<2x8x128xf32>
    %c25_214 = arith.constant 25 : index
    %745 = memref.load %arg9[%c25_214] : memref<48xf32, #tpu.memory_space<smem>>
    %746 = vector.broadcast %745 : f32 to vector<2x8x128xf32>
    %747 = arith.mulf %746, %558 : vector<2x8x128xf32>
    %748 = arith.addf %744, %747 : vector<2x8x128xf32>
    %c26_215 = arith.constant 26 : index
    %749 = memref.load %arg9[%c26_215] : memref<48xf32, #tpu.memory_space<smem>>
    %750 = vector.broadcast %749 : f32 to vector<2x8x128xf32>
    %751 = arith.mulf %750, %641 : vector<2x8x128xf32>
    %752 = arith.addf %748, %751 : vector<2x8x128xf32>
    %c27_216 = arith.constant 27 : index
    %753 = memref.load %arg9[%c27_216] : memref<48xf32, #tpu.memory_space<smem>>
    %754 = vector.broadcast %753 : f32 to vector<2x8x128xf32>
    %755 = arith.mulf %754, %642 : vector<2x8x128xf32>
    %756 = arith.addf %752, %755 : vector<2x8x128xf32>
    %c28_217 = arith.constant 28 : index
    %757 = memref.load %arg9[%c28_217] : memref<48xf32, #tpu.memory_space<smem>>
    %758 = vector.broadcast %757 : f32 to vector<2x8x128xf32>
    %759 = arith.mulf %758, %585 : vector<2x8x128xf32>
    %760 = arith.addf %756, %759 : vector<2x8x128xf32>
    %c29_218 = arith.constant 29 : index
    %761 = memref.load %arg9[%c29_218] : memref<48xf32, #tpu.memory_space<smem>>
    %762 = vector.broadcast %761 : f32 to vector<2x8x128xf32>
    %763 = arith.mulf %762, %643 : vector<2x8x128xf32>
    %764 = arith.addf %760, %763 : vector<2x8x128xf32>
    %c30_219 = arith.constant 30 : index
    %765 = memref.load %arg9[%c30_219] : memref<48xf32, #tpu.memory_space<smem>>
    %766 = vector.broadcast %765 : f32 to vector<2x8x128xf32>
    %767 = arith.mulf %766, %644 : vector<2x8x128xf32>
    %768 = arith.addf %764, %767 : vector<2x8x128xf32>
    %c31_220 = arith.constant 31 : index
    %769 = memref.load %arg9[%c31_220] : memref<48xf32, #tpu.memory_space<smem>>
    %770 = vector.broadcast %769 : f32 to vector<2x8x128xf32>
    %771 = arith.mulf %770, %612 : vector<2x8x128xf32>
    %772 = arith.addf %768, %771 : vector<2x8x128xf32>
    %c32_221 = arith.constant 32 : index
    %773 = memref.load %arg9[%c32_221] : memref<48xf32, #tpu.memory_space<smem>>
    %774 = vector.broadcast %773 : f32 to vector<2x8x128xf32>
    %775 = arith.mulf %774, %645 : vector<2x8x128xf32>
    %776 = arith.addf %772, %775 : vector<2x8x128xf32>
    %c33_222 = arith.constant 33 : index
    %777 = memref.load %arg9[%c33_222] : memref<48xf32, #tpu.memory_space<smem>>
    %778 = vector.broadcast %777 : f32 to vector<2x8x128xf32>
    %779 = arith.mulf %778, %646 : vector<2x8x128xf32>
    %780 = arith.addf %776, %779 : vector<2x8x128xf32>
    %c34_223 = arith.constant 34 : index
    %781 = memref.load %arg9[%c34_223] : memref<48xf32, #tpu.memory_space<smem>>
    %782 = vector.broadcast %781 : f32 to vector<2x8x128xf32>
    %783 = arith.mulf %782, %639 : vector<2x8x128xf32>
    %784 = arith.addf %780, %783 : vector<2x8x128xf32>
    %c35_224 = arith.constant 35 : index
    %785 = memref.load %arg9[%c35_224] : memref<48xf32, #tpu.memory_space<smem>>
    %786 = vector.broadcast %785 : f32 to vector<2x8x128xf32>
    %787 = arith.mulf %786, %647 : vector<2x8x128xf32>
    %788 = arith.addf %784, %787 : vector<2x8x128xf32>
    %c36_225 = arith.constant 36 : index
    %789 = memref.load %arg9[%c36_225] : memref<48xf32, #tpu.memory_space<smem>>
    %790 = vector.broadcast %789 : f32 to vector<2x8x128xf32>
    %791 = arith.mulf %790, %640 : vector<2x8x128xf32>
    %c37_226 = arith.constant 37 : index
    %792 = memref.load %arg9[%c37_226] : memref<48xf32, #tpu.memory_space<smem>>
    %793 = vector.broadcast %792 : f32 to vector<2x8x128xf32>
    %794 = arith.mulf %793, %558 : vector<2x8x128xf32>
    %795 = arith.addf %791, %794 : vector<2x8x128xf32>
    %c38_227 = arith.constant 38 : index
    %796 = memref.load %arg9[%c38_227] : memref<48xf32, #tpu.memory_space<smem>>
    %797 = vector.broadcast %796 : f32 to vector<2x8x128xf32>
    %798 = arith.mulf %797, %641 : vector<2x8x128xf32>
    %799 = arith.addf %795, %798 : vector<2x8x128xf32>
    %c39_228 = arith.constant 39 : index
    %800 = memref.load %arg9[%c39_228] : memref<48xf32, #tpu.memory_space<smem>>
    %801 = vector.broadcast %800 : f32 to vector<2x8x128xf32>
    %802 = arith.mulf %801, %642 : vector<2x8x128xf32>
    %803 = arith.addf %799, %802 : vector<2x8x128xf32>
    %c40_229 = arith.constant 40 : index
    %804 = memref.load %arg9[%c40_229] : memref<48xf32, #tpu.memory_space<smem>>
    %805 = vector.broadcast %804 : f32 to vector<2x8x128xf32>
    %806 = arith.mulf %805, %585 : vector<2x8x128xf32>
    %807 = arith.addf %803, %806 : vector<2x8x128xf32>
    %c41_230 = arith.constant 41 : index
    %808 = memref.load %arg9[%c41_230] : memref<48xf32, #tpu.memory_space<smem>>
    %809 = vector.broadcast %808 : f32 to vector<2x8x128xf32>
    %810 = arith.mulf %809, %643 : vector<2x8x128xf32>
    %811 = arith.addf %807, %810 : vector<2x8x128xf32>
    %c42_231 = arith.constant 42 : index
    %812 = memref.load %arg9[%c42_231] : memref<48xf32, #tpu.memory_space<smem>>
    %813 = vector.broadcast %812 : f32 to vector<2x8x128xf32>
    %814 = arith.mulf %813, %644 : vector<2x8x128xf32>
    %815 = arith.addf %811, %814 : vector<2x8x128xf32>
    %c43_232 = arith.constant 43 : index
    %816 = memref.load %arg9[%c43_232] : memref<48xf32, #tpu.memory_space<smem>>
    %817 = vector.broadcast %816 : f32 to vector<2x8x128xf32>
    %818 = arith.mulf %817, %612 : vector<2x8x128xf32>
    %819 = arith.addf %815, %818 : vector<2x8x128xf32>
    %c44_233 = arith.constant 44 : index
    %820 = memref.load %arg9[%c44_233] : memref<48xf32, #tpu.memory_space<smem>>
    %821 = vector.broadcast %820 : f32 to vector<2x8x128xf32>
    %822 = arith.mulf %821, %645 : vector<2x8x128xf32>
    %823 = arith.addf %819, %822 : vector<2x8x128xf32>
    %c45_234 = arith.constant 45 : index
    %824 = memref.load %arg9[%c45_234] : memref<48xf32, #tpu.memory_space<smem>>
    %825 = vector.broadcast %824 : f32 to vector<2x8x128xf32>
    %826 = arith.mulf %825, %646 : vector<2x8x128xf32>
    %827 = arith.addf %823, %826 : vector<2x8x128xf32>
    %c46_235 = arith.constant 46 : index
    %828 = memref.load %arg9[%c46_235] : memref<48xf32, #tpu.memory_space<smem>>
    %829 = vector.broadcast %828 : f32 to vector<2x8x128xf32>
    %830 = arith.mulf %829, %639 : vector<2x8x128xf32>
    %831 = arith.addf %827, %830 : vector<2x8x128xf32>
    %c47_236 = arith.constant 47 : index
    %832 = memref.load %arg9[%c47_236] : memref<48xf32, #tpu.memory_space<smem>>
    %833 = vector.broadcast %832 : f32 to vector<2x8x128xf32>
    %834 = arith.mulf %833, %647 : vector<2x8x128xf32>
    %835 = arith.addf %831, %834 : vector<2x8x128xf32>
    %c0_237 = arith.constant 0 : index
    %836 = memref.load %arg10[%c0_237] : memref<4xf32, #tpu.memory_space<smem>>
    %837 = vector.broadcast %836 : f32 to vector<2x8x128xf32>
    %838 = arith.addf %694, %837 : vector<2x8x128xf32>
    %c1_238 = arith.constant 1 : index
    %839 = memref.load %arg10[%c1_238] : memref<4xf32, #tpu.memory_space<smem>>
    %840 = vector.broadcast %839 : f32 to vector<2x8x128xf32>
    %841 = arith.addf %741, %840 : vector<2x8x128xf32>
    %c2_239 = arith.constant 2 : index
    %842 = memref.load %arg10[%c2_239] : memref<4xf32, #tpu.memory_space<smem>>
    %843 = vector.broadcast %842 : f32 to vector<2x8x128xf32>
    %844 = arith.addf %788, %843 : vector<2x8x128xf32>
    %c3_240 = arith.constant 3 : index
    %845 = memref.load %arg10[%c3_240] : memref<4xf32, #tpu.memory_space<smem>>
    %846 = vector.broadcast %845 : f32 to vector<2x8x128xf32>
    %847 = arith.addf %835, %846 : vector<2x8x128xf32>
    %848 = vector.shape_cast %838 : vector<2x8x128xf32> to vector<2x1x8x128xf32>
    %849 = vector.shape_cast %841 : vector<2x8x128xf32> to vector<2x1x8x128xf32>
    %850 = vector.shape_cast %844 : vector<2x8x128xf32> to vector<2x1x8x128xf32>
    %851 = vector.shape_cast %847 : vector<2x8x128xf32> to vector<2x1x8x128xf32>
    %852 = tpu.concatenate %848, %849, %850, %851 in 1 : vector<2x1x8x128xf32>, vector<2x1x8x128xf32>, vector<2x1x8x128xf32>, vector<2x1x8x128xf32> -> vector<2x4x8x128xf32>
    %c0_241 = arith.constant 0 : index
    %c0_242 = arith.constant 0 : index
    %c0_243 = arith.constant 0 : index
    %c0_244 = arith.constant 0 : index
    %853 = vector.load %arg11[%c0_241, %c0_242, %c0_243, %c0_244] : memref<2x4x8x128xf32, #tpu.memory_space<vmem>>, vector<2x4x8x128xf32>
    tpu.vector_store %arg11[%c0_241, %c0_242, %c0_243, %c0_244], %852 {strides = array<i32>} : memref<2x4x8x128xf32, #tpu.memory_space<vmem>>, vector<2x4x8x128xf32>,
    return
  }
}

</mosaic_0001>

<llo_original>
// kernel: tpu_custom_call.1
$region0: #{tpu_custom_call.1}
  #allocation0 [shape = 'u32[]', space=smem, size = 0x4, offset = 0x4, fixed_abs, tag = 'smem constant byte address 0x4 - core index']
  #allocation1 [shape = 'u32[144,128]{1,0:T(1,128)}', space=vmem, size = 0x12000, scoped, tag = 'internal scratch']
  %s0 = inlined_call_operand.hbm [shape: f32[2,4,8,128], index: 0, kind: input, shape index: {}]
  %s1 = inlined_call_operand.hbm [shape: f32[2,4,8,128], index: 1, kind: input, shape index: {}]
  %s2 = inlined_call_operand.hbm [shape: f32[2,4,8,128], index: 2, kind: input, shape index: {}]
  %s3 = inlined_call_operand.vmem [shape: f32[48], index: 3, kind: input, shape index: {}]
  %s4 = inlined_call_operand.vmem [shape: f32[4], index: 4, kind: input, shape index: {}]
  %s5 = inlined_call_operand.vmem [shape: f32[4], index: 5, kind: input, shape index: {}]
  %s6 = inlined_call_operand.vmem [shape: f32[48], index: 6, kind: input, shape index: {}]
  %s7 = inlined_call_operand.vmem [shape: f32[4], index: 7, kind: input, shape index: {}]
  %s8 = inlined_call_operand.vmem [shape: f32[4], index: 8, kind: input, shape index: {}]
  %s9 = inlined_call_operand.vmem [shape: f32[48], index: 9, kind: input, shape index: {}]
  %s10 = inlined_call_operand.vmem [shape: f32[4], index: 10, kind: input, shape index: {}]
  %s11 = inlined_call_operand.hbm [shape: f32[2,4,8,128], index: 11, kind: output, shape index: {}]
  %s12 = sld [smem:[#allocation0]]
  $region98: #{tpu_custom_call.1} parent=0
    _
  %s14 = ssub.s32 1, %s12
  %s15 = scalar_select 0, %s14, %s12
  $region1: #{tpu_custom_call.1} parent=0
    #allocation2 [shape = 'u8[32768]{0}', space=vmem, size = 0x8000, scoped, tag = 'input window, operand 0, single buffered']
    #allocation3 [shape = 's32[1]{0}', space=sflag, size = 0x4, scoped, tag = 'scoped memory for tpu_custom_call.1']
    #allocation4 [shape = 's32[1]{0}', space=sflag, size = 0x4, scoped, tag = 'scoped memory for tpu_custom_call.1']
    #allocation5 [shape = 's32[1]{0}', space=sflag, size = 0x4, scoped, tag = 'scoped memory for tpu_custom_call.1']
    #allocation6 [shape = 'u8[32768]{0}', space=vmem, size = 0x8000, scoped, tag = 'input window, operand 1, single buffered']
    #allocation7 [shape = 's32[1]{0}', space=sflag, size = 0x4, scoped, tag = 'scoped memory for tpu_custom_call.1']
    #allocation8 [shape = 'u8[32768]{0}', space=vmem, size = 0x8000, scoped, tag = 'input window, operand 2, single buffered']
    #allocation9 [shape = 'u8[512]{0}', space=smem, size = 0x200, scoped, tag = 'input window, operand 3, single buffered']
    #allocation10 [shape = 'u8[512]{0}', space=smem, size = 0x200, scoped, tag = 'input window, operand 4, single buffered']
    #allocation11 [shape = 's32[1]{0}', space=sflag, size = 0x4, scoped, tag = 'scoped memory for tpu_custom_call.1']
    #allocation12 [shape = 'u8[512]{0}', space=smem, size = 0x200, scoped, tag = 'input window, operand 5, single buffered']
    #allocation13 [shape = 'u8[512]{0}', space=smem, size = 0x200, scoped, tag = 'input window, operand 6, single buffered']
    #allocation14 [shape = 's32[1]{0}', space=sflag, size = 0x4, scoped, tag = 'scoped memory for tpu_custom_call.1']
    #allocation15 [shape = 'u8[512]{0}', space=smem, size = 0x200, scoped, tag = 'input window, operand 7, single buffered']
    #allocation16 [shape = 'u8[512]{0}', space=smem, size = 0x200, scoped, tag = 'input window, operand 8, single buffered']
    #allocation17 [shape = 's32[1]{0}', space=sflag, size = 0x4, scoped, tag = 'scoped memory for tpu_custom_call.1']
    #allocation18 [shape = 'u8[512]{0}', space=smem, size = 0x200, scoped, tag = 'input window, operand 9, single buffered']
    #allocation19 [shape = 'u8[512]{0}', space=smem, size = 0x200, scoped, tag = 'input window, operand 10, single buffered']
    #allocation20 [shape = 's32[1]{0}', space=sflag, size = 0x4, scoped, tag = 'scoped memory for tpu_custom_call.1']
    #allocation21 [shape = 'u8[32768]{0}', space=vmem, size = 0x8000, scoped, tag = 'output window, operand 0, single buffered']
    %16 = vsyncpa [#allocation3], 0
    %17 = vsyncpa [#allocation7], 0
    %18 = vsyncpa [#allocation5], 0
    %19 = vsyncpa [#allocation11], 0
    %20 = vsyncpa [#allocation14], 0
    %21 = vsyncpa [#allocation17], 0
    %22 = vsyncpa [#allocation20], 0
    %23 = vsyncpa [#allocation4], 0
    // Predicated region
    $region2: #{tpu_custom_call.1} parent=1 // pred_check
      _
    $region3: #{tpu_custom_call.1} parent=1 // pred_check_branch
      %25 = sbr.rel (0) target = $region5
    $region4: #{tpu_custom_call.1} parent=1 // pred_region
      %s27 = ssub.s32 1024, 1024
      %28 = vsyncadd [#allocation3], %s27
      %s29 = sshll.u32 [#allocation2], 4
      %s30 = int_to_ptr.vmem [resolvable:$true] %s29
      %35 = dma.hbm_to_vmem [thread:$0]  %s0, 1024, %s30, [#allocation3], 128, 128, 8
    $region5: #{tpu_custom_call.1} parent=1 // pred_fallthru
      _
    // Predicated region
    $region6: #{tpu_custom_call.1} parent=1 // pred_check
      _
    $region7: #{tpu_custom_call.1} parent=1 // pred_check_branch
      %37 = sbr.rel (0) target = $region9
    $region8: #{tpu_custom_call.1} parent=1 // pred_region
      %s39 = ssub.s32 1024, 1024
      %40 = vsyncadd [#allocation7], %s39
      %s41 = sshll.u32 [#allocation6], 4
      %s42 = int_to_ptr.vmem [resolvable:$true] %s41
      %47 = dma.hbm_to_vmem [thread:$0]  %s1, 1024, %s42, [#allocation7], 128, 128, 8
    $region9: #{tpu_custom_call.1} parent=1 // pred_fallthru
      _
    // Predicated region
    $region10: #{tpu_custom_call.1} parent=1 // pred_check
      _
    $region11: #{tpu_custom_call.1} parent=1 // pred_check_branch
      %49 = sbr.rel (0) target = $region13
    $region12: #{tpu_custom_call.1} parent=1 // pred_region
      %s51 = ssub.s32 1024, 1024
      %52 = vsyncadd [#allocation7], %s51
      %s53 = sshll.u32 [#allocation8], 4
      %s54 = int_to_ptr.vmem [resolvable:$true] %s53
      %59 = dma.hbm_to_vmem [thread:$0]  %s2, 1024, %s54, [#allocation7], 128, 128, 8
    $region13: #{tpu_custom_call.1} parent=1 // pred_fallthru
      _
    // Predicated region
    $region14: #{tpu_custom_call.1} parent=1 // pred_check
      _
    $region15: #{tpu_custom_call.1} parent=1 // pred_check_branch
      %61 = sbr.rel (0) target = $region17
    $region16: #{tpu_custom_call.1} parent=1 // pred_region
      %s63 = ssub.s32 16, 16
      %64 = vsyncadd [#allocation5], %s63
      %s66 = sshll.u32 %s3, 4
      %s67 = int_to_ptr.vmem [resolvable:$true] %s66
      %69 = dma.vmem_to_smem %s67, 16, [#allocation9], [#allocation5]
    $region17: #{tpu_custom_call.1} parent=1 // pred_fallthru
      _
    // Predicated region
    $region18: #{tpu_custom_call.1} parent=1 // pred_check
      _
    $region19: #{tpu_custom_call.1} parent=1 // pred_check_branch
      %71 = sbr.rel (0) target = $region21
    $region20: #{tpu_custom_call.1} parent=1 // pred_region
      %s73 = ssub.s32 16, 16
      %74 = vsyncadd [#allocation11], %s73
      %s76 = sshll.u32 %s4, 4
      %s77 = int_to_ptr.vmem [resolvable:$true] %s76
      %79 = dma.vmem_to_smem %s77, 16, [#allocation10], [#allocation11]
    $region21: #{tpu_custom_call.1} parent=1 // pred_fallthru
      _
    // Predicated region
    $region22: #{tpu_custom_call.1} parent=1 // pred_check
      _
    $region23: #{tpu_custom_call.1} parent=1 // pred_check_branch
      %81 = sbr.rel (0) target = $region25
    $region24: #{tpu_custom_call.1} parent=1 // pred_region
      %s83 = ssub.s32 16, 16
      %84 = vsyncadd [#allocation11], %s83
      %s86 = sshll.u32 %s5, 4
      %s87 = int_to_ptr.vmem [resolvable:$true] %s86
      %89 = dma.vmem_to_smem %s87, 16, [#allocation12], [#allocation11]
    $region25: #{tpu_custom_call.1} parent=1 // pred_fallthru
      _
    // Predicated region
    $region26: #{tpu_custom_call.1} parent=1 // pred_check
      _
    $region27: #{tpu_custom_call.1} parent=1 // pred_check_branch
      %91 = sbr.rel (0) target = $region29
    $region28: #{tpu_custom_call.1} parent=1 // pred_region
      %s93 = ssub.s32 16, 16
      %94 = vsyncadd [#allocation14], %s93
      %s96 = sshll.u32 %s6, 4
      %s97 = int_to_ptr.vmem [resolvable:$true] %s96
      %99 = dma.vmem_to_smem %s97, 16, [#allocation13], [#allocation14]
    $region29: #{tpu_custom_call.1} parent=1 // pred_fallthru
      _
    // Predicated region
    $region30: #{tpu_custom_call.1} parent=1 // pred_check
      _
    $region31: #{tpu_custom_call.1} parent=1 // pred_check_branch
      %101 = sbr.rel (0) target = $region33
    $region32: #{tpu_custom_call.1} parent=1 // pred_region
      %s103 = ssub.s32 16, 16
      %104 = vsyncadd [#allocation14], %s103
      %s106 = sshll.u32 %s7, 4
      %s107 = int_to_ptr.vmem [resolvable:$true] %s106
      %109 = dma.vmem_to_smem %s107, 16, [#allocation15], [#allocation14]
    $region33: #{tpu_custom_call.1} parent=1 // pred_fallthru
      _
    // Predicated region
    $region34: #{tpu_custom_call.1} parent=1 // pred_check
      _
    $region35: #{tpu_custom_call.1} parent=1 // pred_check_branch
      %111 = sbr.rel (0) target = $region37
    $region36: #{tpu_custom_call.1} parent=1 // pred_region
      %s113 = ssub.s32 16, 16
      %114 = vsyncadd [#allocation17], %s113
      %s116 = sshll.u32 %s8, 4
      %s117 = int_to_ptr.vmem [resolvable:$true] %s116
      %119 = dma.vmem_to_smem %s117, 16, [#allocation16], [#allocation17]
    $region37: #{tpu_custom_call.1} parent=1 // pred_fallthru
      _
    // Predicated region
    $region38: #{tpu_custom_call.1} parent=1 // pred_check
      _
    $region39: #{tpu_custom_call.1} parent=1 // pred_check_branch
      %121 = sbr.rel (0) target = $region41
    $region40: #{tpu_custom_call.1} parent=1 // pred_region
      %s123 = ssub.s32 16, 16
      %124 = vsyncadd [#allocation17], %s123
      %s126 = sshll.u32 %s9, 4
      %s127 = int_to_ptr.vmem [resolvable:$true] %s126
      %129 = dma.vmem_to_smem %s127, 16, [#allocation18], [#allocation17]
    $region41: #{tpu_custom_call.1} parent=1 // pred_fallthru
      _
    // Predicated region
    $region42: #{tpu_custom_call.1} parent=1 // pred_check
      _
    $region43: #{tpu_custom_call.1} parent=1 // pred_check_branch
      %131 = sbr.rel (0) target = $region45
    $region44: #{tpu_custom_call.1} parent=1 // pred_region
      %s133 = ssub.s32 16, 16
      %134 = vsyncadd [#allocation20], %s133
      %s136 = sshll.u32 %s10, 4
      %s137 = int_to_ptr.vmem [resolvable:$true] %s136
      %139 = dma.vmem_to_smem %s137, 16, [#allocation19], [#allocation20]
    $region45: #{tpu_custom_call.1} parent=1 // pred_fallthru
      _
    // Predicated region
    $region46: #{tpu_custom_call.1} parent=1 // pred_check
      _
    $region47: #{tpu_custom_call.1} parent=1 // pred_check_branch
      %141 = sbr.rel (0) target = $region49
    $region48: #{tpu_custom_call.1} parent=1 // pred_region
      %142 = dma.done [#allocation3], 1024
    $region49: #{tpu_custom_call.1} parent=1 // pred_fallthru
      _
    // Predicated region
    $region50: #{tpu_custom_call.1} parent=1 // pred_check
      _
    $region51: #{tpu_custom_call.1} parent=1 // pred_check_branch
      %144 = sbr.rel (0) target = $region53
    $region52: #{tpu_custom_call.1} parent=1 // pred_region
      %145 = dma.done [#allocation7], 1024
    $region53: #{tpu_custom_call.1} parent=1 // pred_fallthru
      _
    // Predicated region
    $region54: #{tpu_custom_call.1} parent=1 // pred_check
      _
    $region55: #{tpu_custom_call.1} parent=1 // pred_check_branch
      %147 = sbr.rel (0) target = $region57
    $region56: #{tpu_custom_call.1} parent=1 // pred_region
      %148 = dma.done [#allocation7], 1024
    $region57: #{tpu_custom_call.1} parent=1 // pred_fallthru
      _
    // Predicated region
    $region58: #{tpu_custom_call.1} parent=1 // pred_check
      _
    $region59: #{tpu_custom_call.1} parent=1 // pred_check_branch
      %150 = sbr.rel (0) target = $region61
    $region60: #{tpu_custom_call.1} parent=1 // pred_region
      %151 = dma.done [#allocation5], 16
    $region61: #{tpu_custom_call.1} parent=1 // pred_fallthru
      _
    // Predicated region
    $region62: #{tpu_custom_call.1} parent=1 // pred_check
      _
    $region63: #{tpu_custom_call.1} parent=1 // pred_check_branch
      %153 = sbr.rel (0) target = $region65
    $region64: #{tpu_custom_call.1} parent=1 // pred_region
      %154 = dma.done [#allocation11], 16
    $region65: #{tpu_custom_call.1} parent=1 // pred_fallthru
      _
    // Predicated region
    $region66: #{tpu_custom_call.1} parent=1 // pred_check
      _
    $region67: #{tpu_custom_call.1} parent=1 // pred_check_branch
      %156 = sbr.rel (0) target = $region69
    $region68: #{tpu_custom_call.1} parent=1 // pred_region
      %157 = dma.done [#allocation11], 16
    $region69: #{tpu_custom_call.1} parent=1 // pred_fallthru
      _
    // Predicated region
    $region70: #{tpu_custom_call.1} parent=1 // pred_check
      _
    $region71: #{tpu_custom_call.1} parent=1 // pred_check_branch
      %159 = sbr.rel (0) target = $region73
    $region72: #{tpu_custom_call.1} parent=1 // pred_region
      %160 = dma.done [#allocation14], 16
    $region73: #{tpu_custom_call.1} parent=1 // pred_fallthru
      _
    // Predicated region
    $region74: #{tpu_custom_call.1} parent=1 // pred_check
      _
    $region75: #{tpu_custom_call.1} parent=1 // pred_check_branch
      %162 = sbr.rel (0) target = $region77
    $region76: #{tpu_custom_call.1} parent=1 // pred_region
      %163 = dma.done [#allocation14], 16
    $region77: #{tpu_custom_call.1} parent=1 // pred_fallthru
      _
    // Predicated region
    $region78: #{tpu_custom_call.1} parent=1 // pred_check
      _
    $region79: #{tpu_custom_call.1} parent=1 // pred_check_branch
      %165 = sbr.rel (0) target = $region81
    $region80: #{tpu_custom_call.1} parent=1 // pred_region
      %166 = dma.done [#allocation17], 16
    $region81: #{tpu_custom_call.1} parent=1 // pred_fallthru
      _
    // Predicated region
    $region82: #{tpu_custom_call.1} parent=1 // pred_check
      _
    $region83: #{tpu_custom_call.1} parent=1 // pred_check_branch
      %168 = sbr.rel (0) target = $region85
    $region84: #{tpu_custom_call.1} parent=1 // pred_region
      %169 = dma.done [#allocation17], 16
    $region85: #{tpu_custom_call.1} parent=1 // pred_fallthru
      _
    // Predicated region
    $region86: #{tpu_custom_call.1} parent=1 // pred_check
      _
    $region87: #{tpu_custom_call.1} parent=1 // pred_check_branch
      %171 = sbr.rel (0) target = $region89
    $region88: #{tpu_custom_call.1} parent=1 // pred_region
      %172 = dma.done [#allocation20], 16
    $region89: #{tpu_custom_call.1} parent=1 // pred_fallthru
      _
    %173 = sfence
    %v174 = vld [vmem:[#allocation2] sm:$0xff]
    %v175 = vld [vmem:[#allocation2 + $0x20] sm:$0xff]
    %v176 = vld [vmem:[#allocation6] sm:$0xff]
    %v177 = vld [vmem:[#allocation6 + $0x20] sm:$0xff]
    %v178 = vadd.f32 %v174, %v176
    %v179 = vadd.f32 %v175, %v177
    %s180 = scalar_lea.vmem [#allocation2], 8
    %v181 = vld [vmem:[%s180] sm:$0xff]
    %v182 = vld [vmem:[%s180 + $0x20] sm:$0xff]
    %s183 = scalar_lea.vmem [#allocation6], 8
    %v184 = vld [vmem:[%s183] sm:$0xff]
    %v185 = vld [vmem:[%s183 + $0x20] sm:$0xff]
    %v186 = vadd.f32 %v181, %v184
    %v187 = vadd.f32 %v182, %v185
    %s188 = scalar_lea.vmem [#allocation2], 16
    %v189 = vld [vmem:[%s188] sm:$0xff]
    %v190 = vld [vmem:[%s188 + $0x20] sm:$0xff]
    %s191 = scalar_lea.vmem [#allocation6], 16
    %v192 = vld [vmem:[%s191] sm:$0xff]
    %v193 = vld [vmem:[%s191 + $0x20] sm:$0xff]
    %v194 = vadd.f32 %v189, %v192
    %v195 = vadd.f32 %v190, %v193
    %s196 = scalar_lea.vmem [#allocation2], 24
    %v197 = vld [vmem:[%s196] sm:$0xff]
    %v198 = vld [vmem:[%s196 + $0x20] sm:$0xff]
    %s199 = scalar_lea.vmem [#allocation6], 24
    %v200 = vld [vmem:[%s199] sm:$0xff]
    %v201 = vld [vmem:[%s199 + $0x20] sm:$0xff]
    %v202 = vadd.f32 %v197, %v200
    %v203 = vadd.f32 %v198, %v201
    %204 = vrot.lane.b32.xlu0 %v178, 1
    %v205 = vpop.permute.xlu0 %204
    %206 = vrot.lane.b32.xlu0 %v179, 1
    %v207 = vpop.permute.xlu0 %206
    %208 = vrot.lane.b32.xlu0 %v178, 127
    %v209 = vpop.permute.xlu0 %208
    %210 = vrot.lane.b32.xlu0 %v179, 127
    %v211 = vpop.permute.xlu0 %210
    %212 = vrot.lane.b32.xlu0 %v186, 1
    %v213 = vpop.permute.xlu0 %212
    %214 = vrot.lane.b32.xlu0 %v187, 1
    %v215 = vpop.permute.xlu0 %214
    %216 = vrot.lane.b32.xlu0 %v186, 127
    %v217 = vpop.permute.xlu0 %216
    %218 = vrot.lane.b32.xlu0 %v187, 127
    %v219 = vpop.permute.xlu0 %218
    %220 = vrot.lane.b32.xlu0 %v194, 1
    %v221 = vpop.permute.xlu0 %220
    %222 = vrot.lane.b32.xlu0 %v195, 1
    %v223 = vpop.permute.xlu0 %222
    %224 = vrot.lane.b32.xlu0 %v194, 127
    %v225 = vpop.permute.xlu0 %224
    %226 = vrot.lane.b32.xlu0 %v195, 127
    %v227 = vpop.permute.xlu0 %226
    %228 = vrot.lane.b32.xlu0 %v202, 1
    %v229 = vpop.permute.xlu0 %228
    %230 = vrot.lane.b32.xlu0 %v203, 1
    %v231 = vpop.permute.xlu0 %230
    %232 = vrot.lane.b32.xlu0 %v202, 127
    %v233 = vpop.permute.xlu0 %232
    %234 = vrot.lane.b32.xlu0 %v203, 127
    %v235 = vpop.permute.xlu0 %234
    %s236 = sld [smem:[#allocation9]]
    %v237 = vstv %s236
    %v238 = vmul.f32 %v237, %v205
    %v239 = vmul.f32 %v237, %v207
    %s240 = sld [smem:[#allocation9 + $0x1]]
    %v241 = vstv %s240
    %v242 = vmul.f32 %v241, %v178
    %v243 = vmul.f32 %v241, %v179
    %v244 = vadd.f32 %v238, %v242
    %v245 = vadd.f32 %v239, %v243
    %s246 = sld [smem:[#allocation9 + $0x2]]
    %v247 = vstv %s246
    %v248 = vmul.f32 %v247, %v209
    %v249 = vmul.f32 %v247, %v211
    %v250 = vadd.f32 %v244, %v248
    %v251 = vadd.f32 %v245, %v249
    %s252 = sld [smem:[#allocation9 + $0x3]]
    %v253 = vstv %s252
    %v254 = vmul.f32 %v253, %v213
    %v255 = vmul.f32 %v253, %v215
    %v256 = vadd.f32 %v250, %v254
    %v257 = vadd.f32 %v251, %v255
    %s258 = sld [smem:[#allocation9 + $0x4]]
    %v259 = vstv %s258
    %v260 = vmul.f32 %v259, %v186
    %v261 = vmul.f32 %v259, %v187
    %v262 = vadd.f32 %v256, %v260
    %v263 = vadd.f32 %v257, %v261
    %s264 = sld [smem:[#allocation9 + $0x5]]
    %v265 = vstv %s264
    %v266 = vmul.f32 %v265, %v217
    %v267 = vmul.f32 %v265, %v219
    %v268 = vadd.f32 %v262, %v266
    %v269 = vadd.f32 %v263, %v267
    %s270 = sld [smem:[#allocation9 + $0x6]]
    %v271 = vstv %s270
    %v272 = vmul.f32 %v271, %v221
    %v273 = vmul.f32 %v271, %v223
    %v274 = vadd.f32 %v268, %v272
    %v275 = vadd.f32 %v269, %v273
    %s276 = sld [smem:[#allocation9 + $0x7]]
    %v277 = vstv %s276
    %v278 = vmul.f32 %v277, %v194
    %v279 = vmul.f32 %v277, %v195
    %v280 = vadd.f32 %v274, %v278
    %v281 = vadd.f32 %v275, %v279
    %s282 = sld [smem:[#allocation9 + $0x8]]
    %v283 = vstv %s282
    %v284 = vmul.f32 %v283, %v225
    %v285 = vmul.f32 %v283, %v227
    %v286 = vadd.f32 %v280, %v284
    %v287 = vadd.f32 %v281, %v285
    %s288 = sld [smem:[#allocation9 + $0x9]]
    %v289 = vstv %s288
    %v290 = vmul.f32 %v289, %v229
    %v291 = vmul.f32 %v289, %v231
    %v292 = vadd.f32 %v286, %v290
    %v293 = vadd.f32 %v287, %v291
    %s294 = sld [smem:[#allocation9 + $0xa]]
    %v295 = vstv %s294
    %v296 = vmul.f32 %v295, %v202
    %v297 = vmul.f32 %v295, %v203
    %v298 = vadd.f32 %v292, %v296
    %v299 = vadd.f32 %v293, %v297
    %s300 = sld [smem:[#allocation9 + $0xb]]
    %v301 = vstv %s300
    %v302 = vmul.f32 %v301, %v233
    %v303 = vmul.f32 %v301, %v235
    %v304 = vadd.f32 %v298, %v302
    %v305 = vadd.f32 %v299, %v303
    %s306 = sld [smem:[#allocation9 + $0xc]]
    %v307 = vstv %s306
    %v308 = vmul.f32 %v307, %v205
    %v309 = vmul.f32 %v307, %v207
    %s310 = sld [smem:[#allocation9 + $0xd]]
    %v311 = vstv %s310
    %v312 = vmul.f32 %v311, %v178
    %v313 = vmul.f32 %v311, %v179
    %v314 = vadd.f32 %v308, %v312
    %v315 = vadd.f32 %v309, %v313
    %s316 = sld [smem:[#allocation9 + $0xe]]
    %v317 = vstv %s316
    %v318 = vmul.f32 %v317, %v209
    %v319 = vmul.f32 %v317, %v211
    %v320 = vadd.f32 %v314, %v318
    %v321 = vadd.f32 %v315, %v319
    %s322 = sld [smem:[#allocation9 + $0xf]]
    %v323 = vstv %s322
    %v324 = vmul.f32 %v323, %v213
    %v325 = vmul.f32 %v323, %v215
    %v326 = vadd.f32 %v320, %v324
    %v327 = vadd.f32 %v321, %v325
    %s328 = sld [smem:[#allocation9 + $0x10]]
    %v329 = vstv %s328
    %v330 = vmul.f32 %v329, %v186
    %v331 = vmul.f32 %v329, %v187
    %v332 = vadd.f32 %v326, %v330
    %v333 = vadd.f32 %v327, %v331
    %s334 = sld [smem:[#allocation9 + $0x11]]
    %v335 = vstv %s334
    %v336 = vmul.f32 %v335, %v217
    %v337 = vmul.f32 %v335, %v219
    %v338 = vadd.f32 %v332, %v336
    %v339 = vadd.f32 %v333, %v337
    %s340 = sld [smem:[#allocation9 + $0x12]]
    %v341 = vstv %s340
    %v342 = vmul.f32 %v341, %v221
    %v343 = vmul.f32 %v341, %v223
    %v344 = vadd.f32 %v338, %v342
    %v345 = vadd.f32 %v339, %v343
    %s346 = sld [smem:[#allocation9 + $0x13]]
    %v347 = vstv %s346
    %v348 = vmul.f32 %v347, %v194
    %v349 = vmul.f32 %v347, %v195
    %v350 = vadd.f32 %v344, %v348
    %v351 = vadd.f32 %v345, %v349
    %s352 = sld [smem:[#allocation9 + $0x14]]
    %v353 = vstv %s352
    %v354 = vmul.f32 %v353, %v225
    %v355 = vmul.f32 %v353, %v227
    %v356 = vadd.f32 %v350, %v354
    %v357 = vadd.f32 %v351, %v355
    %s358 = sld [smem:[#allocation9 + $0x15]]
    %v359 = vstv %s358
    %v360 = vmul.f32 %v359, %v229
    %v361 = vmul.f32 %v359, %v231
    %v362 = vadd.f32 %v356, %v360
    %v363 = vadd.f32 %v357, %v361
    %s364 = sld [smem:[#allocation9 + $0x16]]
    %v365 = vstv %s364
    %v366 = vmul.f32 %v365, %v202
    %v367 = vmul.f32 %v365, %v203
    %v368 = vadd.f32 %v362, %v366
    %v369 = vadd.f32 %v363, %v367
    %s370 = sld [smem:[#allocation9 + $0x17]]
    %v371 = vstv %s370
    %v372 = vmul.f32 %v371, %v233
    %v373 = vmul.f32 %v371, %v235
    %v374 = vadd.f32 %v368, %v372
    %v375 = vadd.f32 %v369, %v373
    %s376 = sld [smem:[#allocation9 + $0x18]]
    %v377 = vstv %s376
    %v378 = vmul.f32 %v377, %v205
    %v379 = vmul.f32 %v377, %v207
    %s380 = sld [smem:[#allocation9 + $0x19]]
    %v381 = vstv %s380
    %v382 = vmul.f32 %v381, %v178
    %v383 = vmul.f32 %v381, %v179
    %v384 = vadd.f32 %v378, %v382
    %v385 = vadd.f32 %v379, %v383
    %s386 = sld [smem:[#allocation9 + $0x1a]]
    %v387 = vstv %s386
    %v388 = vmul.f32 %v387, %v209
    %v389 = vmul.f32 %v387, %v211
    %v390 = vadd.f32 %v384, %v388
    %v391 = vadd.f32 %v385, %v389
    %s392 = sld [smem:[#allocation9 + $0x1b]]
    %v393 = vstv %s392
    %v394 = vmul.f32 %v393, %v213
    %v395 = vmul.f32 %v393, %v215
    %v396 = vadd.f32 %v390, %v394
    %v397 = vadd.f32 %v391, %v395
    %s398 = sld [smem:[#allocation9 + $0x1c]]
    %v399 = vstv %s398
    %v400 = vmul.f32 %v399, %v186
    %v401 = vmul.f32 %v399, %v187
    %v402 = vadd.f32 %v396, %v400
    %v403 = vadd.f32 %v397, %v401
    %s404 = sld [smem:[#allocation9 + $0x1d]]
    %v405 = vstv %s404
    %v406 = vmul.f32 %v405, %v217
    %v407 = vmul.f32 %v405, %v219
    %v408 = vadd.f32 %v402, %v406
    %v409 = vadd.f32 %v403, %v407
    %s410 = sld [smem:[#allocation9 + $0x1e]]
    %v411 = vstv %s410
    %v412 = vmul.f32 %v411, %v221
    %v413 = vmul.f32 %v411, %v223
    %v414 = vadd.f32 %v408, %v412
    %v415 = vadd.f32 %v409, %v413
    %s416 = sld [smem:[#allocation9 + $0x1f]]
    %v417 = vstv %s416
    %v418 = vmul.f32 %v417, %v194
    %v419 = vmul.f32 %v417, %v195
    %v420 = vadd.f32 %v414, %v418
    %v421 = vadd.f32 %v415, %v419
    %s422 = sld [smem:[#allocation9 + $0x20]]
    %v423 = vstv %s422
    %v424 = vmul.f32 %v423, %v225
    %v425 = vmul.f32 %v423, %v227
    %v426 = vadd.f32 %v420, %v424
    %v427 = vadd.f32 %v421, %v425
    %s428 = sld [smem:[#allocation9 + $0x21]]
    %v429 = vstv %s428
    %v430 = vmul.f32 %v429, %v229
    %v431 = vmul.f32 %v429, %v231
    %v432 = vadd.f32 %v426, %v430
    %v433 = vadd.f32 %v427, %v431
    %s434 = sld [smem:[#allocation9 + $0x22]]
    %v435 = vstv %s434
    %v436 = vmul.f32 %v435, %v202
    %v437 = vmul.f32 %v435, %v203
    %v438 = vadd.f32 %v432, %v436
    %v439 = vadd.f32 %v433, %v437
    %s440 = sld [smem:[#allocation9 + $0x23]]
    %v441 = vstv %s440
    %v442 = vmul.f32 %v441, %v233
    %v443 = vmul.f32 %v441, %v235
    %v444 = vadd.f32 %v438, %v442
    %v445 = vadd.f32 %v439, %v443
    %s446 = sld [smem:[#allocation9 + $0x24]]
    %v447 = vstv %s446
    %v448 = vmul.f32 %v447, %v205
    %v449 = vmul.f32 %v447, %v207
    %s450 = sld [smem:[#allocation9 + $0x25]]
    %v451 = vstv %s450
    %v452 = vmul.f32 %v451, %v178
    %v453 = vmul.f32 %v451, %v179
    %v454 = vadd.f32 %v448, %v452
    %v455 = vadd.f32 %v449, %v453
    %s456 = sld [smem:[#allocation9 + $0x26]]
    %v457 = vstv %s456
    %v458 = vmul.f32 %v457, %v209
    %v459 = vmul.f32 %v457, %v211
    %v460 = vadd.f32 %v454, %v458
    %v461 = vadd.f32 %v455, %v459
    %s462 = sld [smem:[#allocation9 + $0x27]]
    %v463 = vstv %s462
    %v464 = vmul.f32 %v463, %v213
    %v465 = vmul.f32 %v463, %v215
    %v466 = vadd.f32 %v460, %v464
    %v467 = vadd.f32 %v461, %v465
    %s468 = sld [smem:[#allocation9 + $0x28]]
    %v469 = vstv %s468
    %v470 = vmul.f32 %v469, %v186
    %v471 = vmul.f32 %v469, %v187
    %v472 = vadd.f32 %v466, %v470
    %v473 = vadd.f32 %v467, %v471
    %s474 = sld [smem:[#allocation9 + $0x29]]
    %v475 = vstv %s474
    %v476 = vmul.f32 %v475, %v217
    %v477 = vmul.f32 %v475, %v219
    %v478 = vadd.f32 %v472, %v476
    %v479 = vadd.f32 %v473, %v477
    %s480 = sld [smem:[#allocation9 + $0x2a]]
    %v481 = vstv %s480
    %v482 = vmul.f32 %v481, %v221
    %v483 = vmul.f32 %v481, %v223
    %v484 = vadd.f32 %v478, %v482
    %v485 = vadd.f32 %v479, %v483
    %s486 = sld [smem:[#allocation9 + $0x2b]]
    %v487 = vstv %s486
    %v488 = vmul.f32 %v487, %v194
    %v489 = vmul.f32 %v487, %v195
    %v490 = vadd.f32 %v484, %v488
    %v491 = vadd.f32 %v485, %v489
    %s492 = sld [smem:[#allocation9 + $0x2c]]
    %v493 = vstv %s492
    %v494 = vmul.f32 %v493, %v225
    %v495 = vmul.f32 %v493, %v227
    %v496 = vadd.f32 %v490, %v494
    %v497 = vadd.f32 %v491, %v495
    %s498 = sld [smem:[#allocation9 + $0x2d]]
    %v499 = vstv %s498
    %v500 = vmul.f32 %v499, %v229
    %v501 = vmul.f32 %v499, %v231
    %v502 = vadd.f32 %v496, %v500
    %v503 = vadd.f32 %v497, %v501
    %s504 = sld [smem:[#allocation9 + $0x2e]]
    %v505 = vstv %s504
    %v506 = vmul.f32 %v505, %v202
    %v507 = vmul.f32 %v505, %v203
    %v508 = vadd.f32 %v502, %v506
    %v509 = vadd.f32 %v503, %v507
    %s510 = sld [smem:[#allocation9 + $0x2f]]
    %v511 = vstv %s510
    %v512 = vmul.f32 %v511, %v233
    %v513 = vmul.f32 %v511, %v235
    %v514 = vadd.f32 %v508, %v512
    %v515 = vadd.f32 %v509, %v513
    %v516 = vadd.f32 %v304, %v305
    %517 = vadd.xlane.f32.xlu0 %v516
    %v518 = vpop.xlane.xlu0 %517
    %v519 = vrot.slane %v518, 4
    %v520 = vadd.f32 %v518, %v519
    %v521 = vrot.slane %v520, 2
    %v522 = vadd.f32 %v520, %v521
    %v523 = vrot.slane %v522, 1
    %v524 = vadd.f32 %v522, %v523
    %s525 = vtos %v524
    %s526 = smul.f32 %s525, 0.00048828125
    %v527 = vmul.f32 %v304, %v304
    %v528 = vmul.f32 %v305, %v305
    %v529 = vadd.f32 %v527, %v528
    %530 = vadd.xlane.f32.xlu0 %v529
    %v531 = vpop.xlane.xlu0 %530
    %v532 = vrot.slane %v531, 4
    %v533 = vadd.f32 %v531, %v532
    %v534 = vrot.slane %v533, 2
    %v535 = vadd.f32 %v533, %v534
    %v536 = vrot.slane %v535, 1
    %v537 = vadd.f32 %v535, %v536
    %s538 = vtos %v537
    %s539 = smul.f32 %s538, 0.00048828125
    %s540 = smul.f32 %s526, %s526
    %s541 = ssub.f32 %s539, %s540
    %s542 = smax.f32 %s541, 0.0
    %s543 = sadd.f32 %s542, 1e-05
    %v544 = vstv %s543
    %v545 = vrsqrt.pop %v544
    %s546 = vtos %v545
    %v547 = vstv %s526
    %v548 = vsub.f32 %v304, %v547
    %v549 = vsub.f32 %v305, %v547
    %s550 = sld [smem:[#allocation10]]
    %s551 = smul.f32 %s546, %s550
    %v552 = vstv %s551
    %v553 = vmul.f32 %v548, %v552
    %v554 = vmul.f32 %v549, %v552
    %s555 = sld [smem:[#allocation12]]
    %v556 = vstv %s555
    %v557 = vadd.f32 %v553, %v556
    %v558 = vadd.f32 %v554, %v556
    %v559 = vmax.f32 %v557, 0.0
    %v560 = vmax.f32 %v558, 0.0
    %v561 = vadd.f32 %v374, %v375
    %562 = vadd.xlane.f32.xlu0 %v561
    %v563 = vpop.xlane.xlu0 %562
    %v564 = vrot.slane %v563, 4
    %v565 = vadd.f32 %v563, %v564
    %v566 = vrot.slane %v565, 2
    %v567 = vadd.f32 %v565, %v566
    %v568 = vrot.slane %v567, 1
    %v569 = vadd.f32 %v567, %v568
    %s570 = vtos %v569
    %s571 = smul.f32 %s570, 0.00048828125
    %v572 = vmul.f32 %v374, %v374
    %v573 = vmul.f32 %v375, %v375
    %v574 = vadd.f32 %v572, %v573
    %575 = vadd.xlane.f32.xlu0 %v574
    %v576 = vpop.xlane.xlu0 %575
    %v577 = vrot.slane %v576, 4
    %v578 = vadd.f32 %v576, %v577
    %v579 = vrot.slane %v578, 2
    %v580 = vadd.f32 %v578, %v579
    %v581 = vrot.slane %v580, 1
    %v582 = vadd.f32 %v580, %v581
    %s583 = vtos %v582
    %s584 = smul.f32 %s583, 0.00048828125
    %s585 = smul.f32 %s571, %s571
    %s586 = ssub.f32 %s584, %s585
    %s587 = smax.f32 %s586, 0.0
    %s588 = sadd.f32 %s587, 1e-05
    %v589 = vstv %s588
    %v590 = vrsqrt.pop %v589
    %s591 = vtos %v590
    %v592 = vstv %s571
    %v593 = vsub.f32 %v374, %v592
    %v594 = vsub.f32 %v375, %v592
    %s595 = sld [smem:[#allocation10 + $0x1]]
    %s596 = smul.f32 %s591, %s595
    %v597 = vstv %s596
    %v598 = vmul.f32 %v593, %v597
    %v599 = vmul.f32 %v594, %v597
    %s600 = sld [smem:[#allocation12 + $0x1]]
    %v601 = vstv %s600
    %v602 = vadd.f32 %v598, %v601
    %v603 = vadd.f32 %v599, %v601
    %v604 = vmax.f32 %v602, 0.0
    %v605 = vmax.f32 %v603, 0.0
    %v606 = vadd.f32 %v444, %v445
    %607 = vadd.xlane.f32.xlu0 %v606
    %v608 = vpop.xlane.xlu0 %607
    %v609 = vrot.slane %v608, 4
    %v610 = vadd.f32 %v608, %v609
    %v611 = vrot.slane %v610, 2
    %v612 = vadd.f32 %v610, %v611
    %v613 = vrot.slane %v612, 1
    %v614 = vadd.f32 %v612, %v613
    %s615 = vtos %v614
    %s616 = smul.f32 %s615, 0.00048828125
    %v617 = vmul.f32 %v444, %v444
    %v618 = vmul.f32 %v445, %v445
    %v619 = vadd.f32 %v617, %v618
    %620 = vadd.xlane.f32.xlu0 %v619
    %v621 = vpop.xlane.xlu0 %620
    %v622 = vrot.slane %v621, 4
    %v623 = vadd.f32 %v621, %v622
    %v624 = vrot.slane %v623, 2
    %v625 = vadd.f32 %v623, %v624
    %v626 = vrot.slane %v625, 1
    %v627 = vadd.f32 %v625, %v626
    %s628 = vtos %v627
    %s629 = smul.f32 %s628, 0.00048828125
    %s630 = smul.f32 %s616, %s616
    %s631 = ssub.f32 %s629, %s630
    %s632 = smax.f32 %s631, 0.0
    %s633 = sadd.f32 %s632, 1e-05
    %v634 = vstv %s633
    %v635 = vrsqrt.pop %v634
    %s636 = vtos %v635
    %v637 = vstv %s616
    %v638 = vsub.f32 %v444, %v637
    %v639 = vsub.f32 %v445, %v637
    %s640 = sld [smem:[#allocation10 + $0x2]]
    %s641 = smul.f32 %s636, %s640
    %v642 = vstv %s641
    %v643 = vmul.f32 %v638, %v642
    %v644 = vmul.f32 %v639, %v642
    %s645 = sld [smem:[#allocation12 + $0x2]]
    %v646 = vstv %s645
    %v647 = vadd.f32 %v643, %v646
    %v648 = vadd.f32 %v644, %v646
    %v649 = vmax.f32 %v647, 0.0
    %v650 = vmax.f32 %v648, 0.0
    %v651 = vadd.f32 %v514, %v515
    %652 = vadd.xlane.f32.xlu0 %v651
    %v653 = vpop.xlane.xlu0 %652
    %v654 = vrot.slane %v653, 4
    %v655 = vadd.f32 %v653, %v654
    %v656 = vrot.slane %v655, 2
    %v657 = vadd.f32 %v655, %v656
    %v658 = vrot.slane %v657, 1
    %v659 = vadd.f32 %v657, %v658
    %s660 = vtos %v659
    %s661 = smul.f32 %s660, 0.00048828125
    %v662 = vmul.f32 %v514, %v514
    %v663 = vmul.f32 %v515, %v515
    %v664 = vadd.f32 %v662, %v663
    %665 = vadd.xlane.f32.xlu0 %v664
    %v666 = vpop.xlane.xlu0 %665
    %v667 = vrot.slane %v666, 4
    %v668 = vadd.f32 %v666, %v667
    %v669 = vrot.slane %v668, 2
    %v670 = vadd.f32 %v668, %v669
    %v671 = vrot.slane %v670, 1
    %v672 = vadd.f32 %v670, %v671
    %s673 = vtos %v672
    %s674 = smul.f32 %s673, 0.00048828125
    %s675 = smul.f32 %s661, %s661
    %s676 = ssub.f32 %s674, %s675
    %s677 = smax.f32 %s676, 0.0
    %s678 = sadd.f32 %s677, 1e-05
    %v679 = vstv %s678
    %v680 = vrsqrt.pop %v679
    %s681 = vtos %v680
    %v682 = vstv %s661
    %v683 = vsub.f32 %v514, %v682
    %v684 = vsub.f32 %v515, %v682
    %s685 = sld [smem:[#allocation10 + $0x3]]
    %s686 = smul.f32 %s681, %s685
    %v687 = vstv %s686
    %v688 = vmul.f32 %v683, %v687
    %v689 = vmul.f32 %v684, %v687
    %s690 = sld [smem:[#allocation12 + $0x3]]
    %v691 = vstv %s690
    %v692 = vadd.f32 %v688, %v691
    %v693 = vadd.f32 %v689, %v691
    %v694 = vmax.f32 %v692, 0.0
    %v695 = vmax.f32 %v693, 0.0
    %v696 = vld [vmem:[#allocation8] sm:$0xff]
    %v697 = vld [vmem:[#allocation8 + $0x20] sm:$0xff]
    %v698 = vadd.f32 %v559, %v696
    %v699 = vadd.f32 %v560, %v697
    %s700 = scalar_lea.vmem [#allocation8], 8
    %v701 = vld [vmem:[%s700] sm:$0xff]
    %v702 = vld [vmem:[%s700 + $0x20] sm:$0xff]
    %v703 = vadd.f32 %v604, %v701
    %v704 = vadd.f32 %v605, %v702
    %s705 = scalar_lea.vmem [#allocation8], 16
    %v706 = vld [vmem:[%s705] sm:$0xff]
    %v707 = vld [vmem:[%s705 + $0x20] sm:$0xff]
    %v708 = vadd.f32 %v649, %v706
    %v709 = vadd.f32 %v650, %v707
    %s710 = scalar_lea.vmem [#allocation8], 24
    %v711 = vld [vmem:[%s710] sm:$0xff]
    %v712 = vld [vmem:[%s710 + $0x20] sm:$0xff]
    %v713 = vadd.f32 %v694, %v711
    %v714 = vadd.f32 %v695, %v712
    %715 = vrot.lane.b32.xlu0 %v698, 1
    %v716 = vpop.permute.xlu0 %715
    %717 = vrot.lane.b32.xlu0 %v699, 1
    %v718 = vpop.permute.xlu0 %717
    %719 = vrot.lane.b32.xlu0 %v698, 127
    %v720 = vpop.permute.xlu0 %719
    %721 = vrot.lane.b32.xlu0 %v699, 127
    %v722 = vpop.permute.xlu0 %721
    %723 = vrot.lane.b32.xlu0 %v703, 1
    %v724 = vpop.permute.xlu0 %723
    %725 = vrot.lane.b32.xlu0 %v704, 1
    %v726 = vpop.permute.xlu0 %725
    %727 = vrot.lane.b32.xlu0 %v703, 127
    %v728 = vpop.permute.xlu0 %727
    %729 = vrot.lane.b32.xlu0 %v704, 127
    %v730 = vpop.permute.xlu0 %729
    %731 = vrot.lane.b32.xlu0 %v708, 1
    %v732 = vpop.permute.xlu0 %731
    %733 = vrot.lane.b32.xlu0 %v709, 1
    %v734 = vpop.permute.xlu0 %733
    %735 = vrot.lane.b32.xlu0 %v708, 127
    %v736 = vpop.permute.xlu0 %735
    %737 = vrot.lane.b32.xlu0 %v709, 127
    %v738 = vpop.permute.xlu0 %737
    %739 = vrot.lane.b32.xlu0 %v713, 1
    %v740 = vpop.permute.xlu0 %739
    %741 = vrot.lane.b32.xlu0 %v714, 1
    %v742 = vpop.permute.xlu0 %741
    %743 = vrot.lane.b32.xlu0 %v713, 127
    %v744 = vpop.permute.xlu0 %743
    %745 = vrot.lane.b32.xlu0 %v714, 127
    %v746 = vpop.permute.xlu0 %745
    %s747 = sld [smem:[#allocation13]]
    %v748 = vstv %s747
    %v749 = vmul.f32 %v748, %v716
    %v750 = vmul.f32 %v748, %v718
    %s751 = sld [smem:[#allocation13 + $0x1]]
    %v752 = vstv %s751
    %v753 = vmul.f32 %v752, %v698
    %v754 = vmul.f32 %v752, %v699
    %v755 = vadd.f32 %v749, %v753
    %v756 = vadd.f32 %v750, %v754
    %s757 = sld [smem:[#allocation13 + $0x2]]
    %v758 = vstv %s757
    %v759 = vmul.f32 %v758, %v720
    %v760 = vmul.f32 %v758, %v722
    %v761 = vadd.f32 %v755, %v759
    %v762 = vadd.f32 %v756, %v760
    %s763 = sld [smem:[#allocation13 + $0x3]]
    %v764 = vstv %s763
    %v765 = vmul.f32 %v764, %v724
    %v766 = vmul.f32 %v764, %v726
    %v767 = vadd.f32 %v761, %v765
    %v768 = vadd.f32 %v762, %v766
    %s769 = sld [smem:[#allocation13 + $0x4]]
    %v770 = vstv %s769
    %v771 = vmul.f32 %v770, %v703
    %v772 = vmul.f32 %v770, %v704
    %v773 = vadd.f32 %v767, %v771
    %v774 = vadd.f32 %v768, %v772
    %s775 = sld [smem:[#allocation13 + $0x5]]
    %v776 = vstv %s775
    %v777 = vmul.f32 %v776, %v728
    %v778 = vmul.f32 %v776, %v730
    %v779 = vadd.f32 %v773, %v777
    %v780 = vadd.f32 %v774, %v778
    %s781 = sld [smem:[#allocation13 + $0x6]]
    %v782 = vstv %s781
    %v783 = vmul.f32 %v782, %v732
    %v784 = vmul.f32 %v782, %v734
    %v785 = vadd.f32 %v779, %v783
    %v786 = vadd.f32 %v780, %v784
    %s787 = sld [smem:[#allocation13 + $0x7]]
    %v788 = vstv %s787
    %v789 = vmul.f32 %v788, %v708
    %v790 = vmul.f32 %v788, %v709
    %v791 = vadd.f32 %v785, %v789
    %v792 = vadd.f32 %v786, %v790
    %s793 = sld [smem:[#allocation13 + $0x8]]
    %v794 = vstv %s793
    %v795 = vmul.f32 %v794, %v736
    %v796 = vmul.f32 %v794, %v738
    %v797 = vadd.f32 %v791, %v795
    %v798 = vadd.f32 %v792, %v796
    %s799 = sld [smem:[#allocation13 + $0x9]]
    %v800 = vstv %s799
    %v801 = vmul.f32 %v800, %v740
    %v802 = vmul.f32 %v800, %v742
    %v803 = vadd.f32 %v797, %v801
    %v804 = vadd.f32 %v798, %v802
    %s805 = sld [smem:[#allocation13 + $0xa]]
    %v806 = vstv %s805
    %v807 = vmul.f32 %v806, %v713
    %v808 = vmul.f32 %v806, %v714
    %v809 = vadd.f32 %v803, %v807
    %v810 = vadd.f32 %v804, %v808
    %s811 = sld [smem:[#allocation13 + $0xb]]
    %v812 = vstv %s811
    %v813 = vmul.f32 %v812, %v744
    %v814 = vmul.f32 %v812, %v746
    %v815 = vadd.f32 %v809, %v813
    %v816 = vadd.f32 %v810, %v814
    %s817 = sld [smem:[#allocation13 + $0xc]]
    %v818 = vstv %s817
    %v819 = vmul.f32 %v818, %v716
    %v820 = vmul.f32 %v818, %v718
    %s821 = sld [smem:[#allocation13 + $0xd]]
    %v822 = vstv %s821
    %v823 = vmul.f32 %v822, %v698
    %v824 = vmul.f32 %v822, %v699
    %v825 = vadd.f32 %v819, %v823
    %v826 = vadd.f32 %v820, %v824
    %s827 = sld [smem:[#allocation13 + $0xe]]
    %v828 = vstv %s827
    %v829 = vmul.f32 %v828, %v720
    %v830 = vmul.f32 %v828, %v722
    %v831 = vadd.f32 %v825, %v829
    %v832 = vadd.f32 %v826, %v830
    %s833 = sld [smem:[#allocation13 + $0xf]]
    %v834 = vstv %s833
    %v835 = vmul.f32 %v834, %v724
    %v836 = vmul.f32 %v834, %v726
    %v837 = vadd.f32 %v831, %v835
    %v838 = vadd.f32 %v832, %v836
    %s839 = sld [smem:[#allocation13 + $0x10]]
    %v840 = vstv %s839
    %v841 = vmul.f32 %v840, %v703
    %v842 = vmul.f32 %v840, %v704
    %v843 = vadd.f32 %v837, %v841
    %v844 = vadd.f32 %v838, %v842
    %s845 = sld [smem:[#allocation13 + $0x11]]
    %v846 = vstv %s845
    %v847 = vmul.f32 %v846, %v728
    %v848 = vmul.f32 %v846, %v730
    %v849 = vadd.f32 %v843, %v847
    %v850 = vadd.f32 %v844, %v848
    %s851 = sld [smem:[#allocation13 + $0x12]]
    %v852 = vstv %s851
    %v853 = vmul.f32 %v852, %v732
    %v854 = vmul.f32 %v852, %v734
    %v855 = vadd.f32 %v849, %v853
    %v856 = vadd.f32 %v850, %v854
    %s857 = sld [smem:[#allocation13 + $0x13]]
    %v858 = vstv %s857
    %v859 = vmul.f32 %v858, %v708
    %v860 = vmul.f32 %v858, %v709
    %v861 = vadd.f32 %v855, %v859
    %v862 = vadd.f32 %v856, %v860
    %s863 = sld [smem:[#allocation13 + $0x14]]
    %v864 = vstv %s863
    %v865 = vmul.f32 %v864, %v736
    %v866 = vmul.f32 %v864, %v738
    %v867 = vadd.f32 %v861, %v865
    %v868 = vadd.f32 %v862, %v866
    %s869 = sld [smem:[#allocation13 + $0x15]]
    %v870 = vstv %s869
    %v871 = vmul.f32 %v870, %v740
    %v872 = vmul.f32 %v870, %v742
    %v873 = vadd.f32 %v867, %v871
    %v874 = vadd.f32 %v868, %v872
    %s875 = sld [smem:[#allocation13 + $0x16]]
    %v876 = vstv %s875
    %v877 = vmul.f32 %v876, %v713
    %v878 = vmul.f32 %v876, %v714
    %v879 = vadd.f32 %v873, %v877
    %v880 = vadd.f32 %v874, %v878
    %s881 = sld [smem:[#allocation13 + $0x17]]
    %v882 = vstv %s881
    %v883 = vmul.f32 %v882, %v744
    %v884 = vmul.f32 %v882, %v746
    %v885 = vadd.f32 %v879, %v883
    %v886 = vadd.f32 %v880, %v884
    %s887 = sld [smem:[#allocation13 + $0x18]]
    %v888 = vstv %s887
    %v889 = vmul.f32 %v888, %v716
    %v890 = vmul.f32 %v888, %v718
    %s891 = sld [smem:[#allocation13 + $0x19]]
    %v892 = vstv %s891
    %v893 = vmul.f32 %v892, %v698
    %v894 = vmul.f32 %v892, %v699
    %v895 = vadd.f32 %v889, %v893
    %v896 = vadd.f32 %v890, %v894
    %s897 = sld [smem:[#allocation13 + $0x1a]]
    %v898 = vstv %s897
    %v899 = vmul.f32 %v898, %v720
    %v900 = vmul.f32 %v898, %v722
    %v901 = vadd.f32 %v895, %v899
    %v902 = vadd.f32 %v896, %v900
    %s903 = sld [smem:[#allocation13 + $0x1b]]
    %v904 = vstv %s903
    %v905 = vmul.f32 %v904, %v724
    %v906 = vmul.f32 %v904, %v726
    %v907 = vadd.f32 %v901, %v905
    %v908 = vadd.f32 %v902, %v906
    %s909 = sld [smem:[#allocation13 + $0x1c]]
    %v910 = vstv %s909
    %v911 = vmul.f32 %v910, %v703
    %v912 = vmul.f32 %v910, %v704
    %v913 = vadd.f32 %v907, %v911
    %v914 = vadd.f32 %v908, %v912
    %s915 = sld [smem:[#allocation13 + $0x1d]]
    %v916 = vstv %s915
    %v917 = vmul.f32 %v916, %v728
    %v918 = vmul.f32 %v916, %v730
    %v919 = vadd.f32 %v913, %v917
    %v920 = vadd.f32 %v914, %v918
    %s921 = sld [smem:[#allocation13 + $0x1e]]
    %v922 = vstv %s921
    %v923 = vmul.f32 %v922, %v732
    %v924 = vmul.f32 %v922, %v734
    %v925 = vadd.f32 %v919, %v923
    %v926 = vadd.f32 %v920, %v924
    %s927 = sld [smem:[#allocation13 + $0x1f]]
    %v928 = vstv %s927
    %v929 = vmul.f32 %v928, %v708
    %v930 = vmul.f32 %v928, %v709
    %v931 = vadd.f32 %v925, %v929
    %v932 = vadd.f32 %v926, %v930
    %s933 = sld [smem:[#allocation13 + $0x20]]
    %v934 = vstv %s933
    %v935 = vmul.f32 %v934, %v736
    %v936 = vmul.f32 %v934, %v738
    %v937 = vadd.f32 %v931, %v935
    %v938 = vadd.f32 %v932, %v936
    %s939 = sld [smem:[#allocation13 + $0x21]]
    %v940 = vstv %s939
    %v941 = vmul.f32 %v940, %v740
    %v942 = vmul.f32 %v940, %v742
    %v943 = vadd.f32 %v937, %v941
    %v944 = vadd.f32 %v938, %v942
    %s945 = sld [smem:[#allocation13 + $0x22]]
    %v946 = vstv %s945
    %v947 = vmul.f32 %v946, %v713
    %v948 = vmul.f32 %v946, %v714
    %v949 = vadd.f32 %v943, %v947
    %v950 = vadd.f32 %v944, %v948
    %s951 = sld [smem:[#allocation13 + $0x23]]
    %v952 = vstv %s951
    %v953 = vmul.f32 %v952, %v744
    %v954 = vmul.f32 %v952, %v746
    %v955 = vadd.f32 %v949, %v953
    %v956 = vadd.f32 %v950, %v954
    %s957 = sld [smem:[#allocation13 + $0x24]]
    %v958 = vstv %s957
    %v959 = vmul.f32 %v958, %v716
    %v960 = vmul.f32 %v958, %v718
    %s961 = sld [smem:[#allocation13 + $0x25]]
    %v962 = vstv %s961
    %v963 = vmul.f32 %v962, %v698
    %v964 = vmul.f32 %v962, %v699
    %v965 = vadd.f32 %v959, %v963
    %v966 = vadd.f32 %v960, %v964
    %s967 = sld [smem:[#allocation13 + $0x26]]
    %v968 = vstv %s967
    %v969 = vmul.f32 %v968, %v720
    %v970 = vmul.f32 %v968, %v722
    %v971 = vadd.f32 %v965, %v969
    %v972 = vadd.f32 %v966, %v970
    %s973 = sld [smem:[#allocation13 + $0x27]]
    %v974 = vstv %s973
    %v975 = vmul.f32 %v974, %v724
    %v976 = vmul.f32 %v974, %v726
    %v977 = vadd.f32 %v971, %v975
    %v978 = vadd.f32 %v972, %v976
    %s979 = sld [smem:[#allocation13 + $0x28]]
    %v980 = vstv %s979
    %v981 = vmul.f32 %v980, %v703
    %v982 = vmul.f32 %v980, %v704
    %v983 = vadd.f32 %v977, %v981
    %v984 = vadd.f32 %v978, %v982
    %s985 = sld [smem:[#allocation13 + $0x29]]
    %v986 = vstv %s985
    %v987 = vmul.f32 %v986, %v728
    %v988 = vmul.f32 %v986, %v730
    %v989 = vadd.f32 %v983, %v987
    %v990 = vadd.f32 %v984, %v988
    %s991 = sld [smem:[#allocation13 + $0x2a]]
    %v992 = vstv %s991
    %v993 = vmul.f32 %v992, %v732
    %v994 = vmul.f32 %v992, %v734
    %v995 = vadd.f32 %v989, %v993
    %v996 = vadd.f32 %v990, %v994
    %s997 = sld [smem:[#allocation13 + $0x2b]]
    %v998 = vstv %s997
    %v999 = vmul.f32 %v998, %v708
    %v1000 = vmul.f32 %v998, %v709
    %v1001 = vadd.f32 %v995, %v999
    %v1002 = vadd.f32 %v996, %v1000
    %s1003 = sld [smem:[#allocation13 + $0x2c]]
    %v1004 = vstv %s1003
    %v1005 = vmul.f32 %v1004, %v736
    %v1006 = vmul.f32 %v1004, %v738
    %v1007 = vadd.f32 %v1001, %v1005
    %v1008 = vadd.f32 %v1002, %v1006
    %s1009 = sld [smem:[#allocation13 + $0x2d]]
    %v1010 = vstv %s1009
    %v1011 = vmul.f32 %v1010, %v740
    %v1012 = vmul.f32 %v1010, %v742
    %v1013 = vadd.f32 %v1007, %v1011
    %v1014 = vadd.f32 %v1008, %v1012
    %s1015 = sld [smem:[#allocation13 + $0x2e]]
    %v1016 = vstv %s1015
    %v1017 = vmul.f32 %v1016, %v713
    %v1018 = vmul.f32 %v1016, %v714
    %v1019 = vadd.f32 %v1013, %v1017
    %v1020 = vadd.f32 %v1014, %v1018
    %s1021 = sld [smem:[#allocation13 + $0x2f]]
    %v1022 = vstv %s1021
    %v1023 = vmul.f32 %v1022, %v744
    %v1024 = vmul.f32 %v1022, %v746
    %v1025 = vadd.f32 %v1019, %v1023
    %v1026 = vadd.f32 %v1020, %v1024
    %v1027 = vadd.f32 %v815, %v816
    %1028 = vadd.xlane.f32.xlu0 %v1027
    %v1029 = vpop.xlane.xlu0 %1028
    %v1030 = vrot.slane %v1029, 4
    %v1031 = vadd.f32 %v1029, %v1030
    %v1032 = vrot.slane %v1031, 2
    %v1033 = vadd.f32 %v1031, %v1032
    %v1034 = vrot.slane %v1033, 1
    %v1035 = vadd.f32 %v1033, %v1034
    %s1036 = vtos %v1035
    %s1037 = smul.f32 %s1036, 0.00048828125
    %v1038 = vmul.f32 %v815, %v815
    %v1039 = vmul.f32 %v816, %v816
    %v1040 = vadd.f32 %v1038, %v1039
    %1041 = vadd.xlane.f32.xlu0 %v1040
    %v1042 = vpop.xlane.xlu0 %1041
    %v1043 = vrot.slane %v1042, 4
    %v1044 = vadd.f32 %v1042, %v1043
    %v1045 = vrot.slane %v1044, 2
    %v1046 = vadd.f32 %v1044, %v1045
    %v1047 = vrot.slane %v1046, 1
    %v1048 = vadd.f32 %v1046, %v1047
    %s1049 = vtos %v1048
    %s1050 = smul.f32 %s1049, 0.00048828125
    %s1051 = smul.f32 %s1037, %s1037
    %s1052 = ssub.f32 %s1050, %s1051
    %s1053 = smax.f32 %s1052, 0.0
    %s1054 = sadd.f32 %s1053, 1e-05
    %v1055 = vstv %s1054
    %v1056 = vrsqrt.pop %v1055
    %s1057 = vtos %v1056
    %v1058 = vstv %s1037
    %v1059 = vsub.f32 %v815, %v1058
    %v1060 = vsub.f32 %v816, %v1058
    %s1061 = sld [smem:[#allocation15]]
    %s1062 = smul.f32 %s1057, %s1061
    %v1063 = vstv %s1062
    %v1064 = vmul.f32 %v1059, %v1063
    %v1065 = vmul.f32 %v1060, %v1063
    %s1066 = sld [smem:[#allocation16]]
    %v1067 = vstv %s1066
    %v1068 = vadd.f32 %v1064, %v1067
    %v1069 = vadd.f32 %v1065, %v1067
    %v1070 = vmax.f32 %v1068, 0.0
    %v1071 = vmax.f32 %v1069, 0.0
    %v1072 = vadd.f32 %v885, %v886
    %1073 = vadd.xlane.f32.xlu0 %v1072
    %v1074 = vpop.xlane.xlu0 %1073
    %v1075 = vrot.slane %v1074, 4
    %v1076 = vadd.f32 %v1074, %v1075
    %v1077 = vrot.slane %v1076, 2
    %v1078 = vadd.f32 %v1076, %v1077
    %v1079 = vrot.slane %v1078, 1
    %v1080 = vadd.f32 %v1078, %v1079
    %s1081 = vtos %v1080
    %s1082 = smul.f32 %s1081, 0.00048828125
    %v1083 = vmul.f32 %v885, %v885
    %v1084 = vmul.f32 %v886, %v886
    %v1085 = vadd.f32 %v1083, %v1084
    %1086 = vadd.xlane.f32.xlu0 %v1085
    %v1087 = vpop.xlane.xlu0 %1086
    %v1088 = vrot.slane %v1087, 4
    %v1089 = vadd.f32 %v1087, %v1088
    %v1090 = vrot.slane %v1089, 2
    %v1091 = vadd.f32 %v1089, %v1090
    %v1092 = vrot.slane %v1091, 1
    %v1093 = vadd.f32 %v1091, %v1092
    %s1094 = vtos %v1093
    %s1095 = smul.f32 %s1094, 0.00048828125
    %s1096 = smul.f32 %s1082, %s1082
    %s1097 = ssub.f32 %s1095, %s1096
    %s1098 = smax.f32 %s1097, 0.0
    %s1099 = sadd.f32 %s1098, 1e-05
    %v1100 = vstv %s1099
    %v1101 = vrsqrt.pop %v1100
    %s1102 = vtos %v1101
    %v1103 = vstv %s1082
    %v1104 = vsub.f32 %v885, %v1103
    %v1105 = vsub.f32 %v886, %v1103
    %s1106 = sld [smem:[#allocation15 + $0x1]]
    %s1107 = smul.f32 %s1102, %s1106
    %v1108 = vstv %s1107
    %v1109 = vmul.f32 %v1104, %v1108
    %v1110 = vmul.f32 %v1105, %v1108
    %s1111 = sld [smem:[#allocation16 + $0x1]]
    %v1112 = vstv %s1111
    %v1113 = vadd.f32 %v1109, %v1112
    %v1114 = vadd.f32 %v1110, %v1112
    %v1115 = vmax.f32 %v1113, 0.0
    %v1116 = vmax.f32 %v1114, 0.0
    %v1117 = vadd.f32 %v955, %v956
    %1118 = vadd.xlane.f32.xlu0 %v1117
    %v1119 = vpop.xlane.xlu0 %1118
    %v1120 = vrot.slane %v1119, 4
    %v1121 = vadd.f32 %v1119, %v1120
    %v1122 = vrot.slane %v1121, 2
    %v1123 = vadd.f32 %v1121, %v1122
    %v1124 = vrot.slane %v1123, 1
    %v1125 = vadd.f32 %v1123, %v1124
    %s1126 = vtos %v1125
    %s1127 = smul.f32 %s1126, 0.00048828125
    %v1128 = vmul.f32 %v955, %v955
    %v1129 = vmul.f32 %v956, %v956
    %v1130 = vadd.f32 %v1128, %v1129
    %1131 = vadd.xlane.f32.xlu0 %v1130
    %v1132 = vpop.xlane.xlu0 %1131
    %v1133 = vrot.slane %v1132, 4
    %v1134 = vadd.f32 %v1132, %v1133
    %v1135 = vrot.slane %v1134, 2
    %v1136 = vadd.f32 %v1134, %v1135
    %v1137 = vrot.slane %v1136, 1
    %v1138 = vadd.f32 %v1136, %v1137
    %s1139 = vtos %v1138
    %s1140 = smul.f32 %s1139, 0.00048828125
    %s1141 = smul.f32 %s1127, %s1127
    %s1142 = ssub.f32 %s1140, %s1141
    %s1143 = smax.f32 %s1142, 0.0
    %s1144 = sadd.f32 %s1143, 1e-05
    %v1145 = vstv %s1144
    %v1146 = vrsqrt.pop %v1145
    %s1147 = vtos %v1146
    %v1148 = vstv %s1127
    %v1149 = vsub.f32 %v955, %v1148
    %v1150 = vsub.f32 %v956, %v1148
    %s1151 = sld [smem:[#allocation15 + $0x2]]
    %s1152 = smul.f32 %s1147, %s1151
    %v1153 = vstv %s1152
    %v1154 = vmul.f32 %v1149, %v1153
    %v1155 = vmul.f32 %v1150, %v1153
    %s1156 = sld [smem:[#allocation16 + $0x2]]
    %v1157 = vstv %s1156
    %v1158 = vadd.f32 %v1154, %v1157
    %v1159 = vadd.f32 %v1155, %v1157
    %v1160 = vmax.f32 %v1158, 0.0
    %v1161 = vmax.f32 %v1159, 0.0
    %v1162 = vadd.f32 %v1025, %v1026
    %1163 = vadd.xlane.f32.xlu0 %v1162
    %v1164 = vpop.xlane.xlu0 %1163
    %v1165 = vrot.slane %v1164, 4
    %v1166 = vadd.f32 %v1164, %v1165
    %v1167 = vrot.slane %v1166, 2
    %v1168 = vadd.f32 %v1166, %v1167
    %v1169 = vrot.slane %v1168, 1
    %v1170 = vadd.f32 %v1168, %v1169
    %s1171 = vtos %v1170
    %s1172 = smul.f32 %s1171, 0.00048828125
    %v1173 = vmul.f32 %v1025, %v1025
    %v1174 = vmul.f32 %v1026, %v1026
    %v1175 = vadd.f32 %v1173, %v1174
    %1176 = vadd.xlane.f32.xlu0 %v1175
    %v1177 = vpop.xlane.xlu0 %1176
    %v1178 = vrot.slane %v1177, 4
    %v1179 = vadd.f32 %v1177, %v1178
    %v1180 = vrot.slane %v1179, 2
    %v1181 = vadd.f32 %v1179, %v1180
    %v1182 = vrot.slane %v1181, 1
    %v1183 = vadd.f32 %v1181, %v1182
    %s1184 = vtos %v1183
    %s1185 = smul.f32 %s1184, 0.00048828125
    %s1186 = smul.f32 %s1172, %s1172
    %s1187 = ssub.f32 %s1185, %s1186
    %s1188 = smax.f32 %s1187, 0.0
    %s1189 = sadd.f32 %s1188, 1e-05
    %v1190 = vstv %s1189
    %v1191 = vrsqrt.pop %v1190
    %s1192 = vtos %v1191
    %v1193 = vstv %s1172
    %v1194 = vsub.f32 %v1025, %v1193
    %v1195 = vsub.f32 %v1026, %v1193
    %s1196 = sld [smem:[#allocation15 + $0x3]]
    %s1197 = smul.f32 %s1192, %s1196
    %v1198 = vstv %s1197
    %v1199 = vmul.f32 %v1194, %v1198
    %v1200 = vmul.f32 %v1195, %v1198
    %s1201 = sld [smem:[#allocation16 + $0x3]]
    %v1202 = vstv %s1201
    %v1203 = vadd.f32 %v1199, %v1202
    %v1204 = vadd.f32 %v1200, %v1202
    %v1205 = vmax.f32 %v1203, 0.0
    %v1206 = vmax.f32 %v1204, 0.0
    %1207 = vrot.lane.b32.xlu0 %v1070, 1
    %v1208 = vpop.permute.xlu0 %1207
    %1209 = vrot.lane.b32.xlu0 %v1071, 1
    %v1210 = vpop.permute.xlu0 %1209
    %1211 = vrot.lane.b32.xlu0 %v1070, 127
    %v1212 = vpop.permute.xlu0 %1211
    %1213 = vrot.lane.b32.xlu0 %v1071, 127
    %v1214 = vpop.permute.xlu0 %1213
    %1215 = vrot.lane.b32.xlu0 %v1115, 1
    %v1216 = vpop.permute.xlu0 %1215
    %1217 = vrot.lane.b32.xlu0 %v1116, 1
    %v1218 = vpop.permute.xlu0 %1217
    %1219 = vrot.lane.b32.xlu0 %v1115, 127
    %v1220 = vpop.permute.xlu0 %1219
    %1221 = vrot.lane.b32.xlu0 %v1116, 127
    %v1222 = vpop.permute.xlu0 %1221
    %1223 = vrot.lane.b32.xlu0 %v1160, 1
    %v1224 = vpop.permute.xlu0 %1223
    %1225 = vrot.lane.b32.xlu0 %v1161, 1
    %v1226 = vpop.permute.xlu0 %1225
    %1227 = vrot.lane.b32.xlu0 %v1160, 127
    %v1228 = vpop.permute.xlu0 %1227
    %1229 = vrot.lane.b32.xlu0 %v1161, 127
    %v1230 = vpop.permute.xlu0 %1229
    %1231 = vrot.lane.b32.xlu0 %v1205, 1
    %v1232 = vpop.permute.xlu0 %1231
    %1233 = vrot.lane.b32.xlu0 %v1206, 1
    %v1234 = vpop.permute.xlu0 %1233
    %1235 = vrot.lane.b32.xlu0 %v1205, 127
    %v1236 = vpop.permute.xlu0 %1235
    %1237 = vrot.lane.b32.xlu0 %v1206, 127
    %v1238 = vpop.permute.xlu0 %1237
    %s1239 = sld [smem:[#allocation18]]
    %v1240 = vstv %s1239
    %v1241 = vmul.f32 %v1240, %v1208
    %v1242 = vmul.f32 %v1240, %v1210
    %s1243 = sld [smem:[#allocation18 + $0x1]]
    %v1244 = vstv %s1243
    %v1245 = vmul.f32 %v1244, %v1070
    %v1246 = vmul.f32 %v1244, %v1071
    %v1247 = vadd.f32 %v1241, %v1245
    %v1248 = vadd.f32 %v1242, %v1246
    %s1249 = sld [smem:[#allocation18 + $0x2]]
    %v1250 = vstv %s1249
    %v1251 = vmul.f32 %v1250, %v1212
    %v1252 = vmul.f32 %v1250, %v1214
    %v1253 = vadd.f32 %v1247, %v1251
    %v1254 = vadd.f32 %v1248, %v1252
    %s1255 = sld [smem:[#allocation18 + $0x3]]
    %v1256 = vstv %s1255
    %v1257 = vmul.f32 %v1256, %v1216
    %v1258 = vmul.f32 %v1256, %v1218
    %v1259 = vadd.f32 %v1253, %v1257
    %v1260 = vadd.f32 %v1254, %v1258
    %s1261 = sld [smem:[#allocation18 + $0x4]]
    %v1262 = vstv %s1261
    %v1263 = vmul.f32 %v1262, %v1115
    %v1264 = vmul.f32 %v1262, %v1116
    %v1265 = vadd.f32 %v1259, %v1263
    %v1266 = vadd.f32 %v1260, %v1264
    %s1267 = sld [smem:[#allocation18 + $0x5]]
    %v1268 = vstv %s1267
    %v1269 = vmul.f32 %v1268, %v1220
    %v1270 = vmul.f32 %v1268, %v1222
    %v1271 = vadd.f32 %v1265, %v1269
    %v1272 = vadd.f32 %v1266, %v1270
    %s1273 = sld [smem:[#allocation18 + $0x6]]
    %v1274 = vstv %s1273
    %v1275 = vmul.f32 %v1274, %v1224
    %v1276 = vmul.f32 %v1274, %v1226
    %v1277 = vadd.f32 %v1271, %v1275
    %v1278 = vadd.f32 %v1272, %v1276
    %s1279 = sld [smem:[#allocation18 + $0x7]]
    %v1280 = vstv %s1279
    %v1281 = vmul.f32 %v1280, %v1160
    %v1282 = vmul.f32 %v1280, %v1161
    %v1283 = vadd.f32 %v1277, %v1281
    %v1284 = vadd.f32 %v1278, %v1282
    %s1285 = sld [smem:[#allocation18 + $0x8]]
    %v1286 = vstv %s1285
    %v1287 = vmul.f32 %v1286, %v1228
    %v1288 = vmul.f32 %v1286, %v1230
    %v1289 = vadd.f32 %v1283, %v1287
    %v1290 = vadd.f32 %v1284, %v1288
    %s1291 = sld [smem:[#allocation18 + $0x9]]
    %v1292 = vstv %s1291
    %v1293 = vmul.f32 %v1292, %v1232
    %v1294 = vmul.f32 %v1292, %v1234
    %v1295 = vadd.f32 %v1289, %v1293
    %v1296 = vadd.f32 %v1290, %v1294
    %s1297 = sld [smem:[#allocation18 + $0xa]]
    %v1298 = vstv %s1297
    %v1299 = vmul.f32 %v1298, %v1205
    %v1300 = vmul.f32 %v1298, %v1206
    %v1301 = vadd.f32 %v1295, %v1299
    %v1302 = vadd.f32 %v1296, %v1300
    %s1303 = sld [smem:[#allocation18 + $0xb]]
    %v1304 = vstv %s1303
    %v1305 = vmul.f32 %v1304, %v1236
    %v1306 = vmul.f32 %v1304, %v1238
    %v1307 = vadd.f32 %v1301, %v1305
    %v1308 = vadd.f32 %v1302, %v1306
    %s1309 = sld [smem:[#allocation18 + $0xc]]
    %v1310 = vstv %s1309
    %v1311 = vmul.f32 %v1310, %v1208
    %v1312 = vmul.f32 %v1310, %v1210
    %s1313 = sld [smem:[#allocation18 + $0xd]]
    %v1314 = vstv %s1313
    %v1315 = vmul.f32 %v1314, %v1070
    %v1316 = vmul.f32 %v1314, %v1071
    %v1317 = vadd.f32 %v1311, %v1315
    %v1318 = vadd.f32 %v1312, %v1316
    %s1319 = sld [smem:[#allocation18 + $0xe]]
    %v1320 = vstv %s1319
    %v1321 = vmul.f32 %v1320, %v1212
    %v1322 = vmul.f32 %v1320, %v1214
    %v1323 = vadd.f32 %v1317, %v1321
    %v1324 = vadd.f32 %v1318, %v1322
    %s1325 = sld [smem:[#allocation18 + $0xf]]
    %v1326 = vstv %s1325
    %v1327 = vmul.f32 %v1326, %v1216
    %v1328 = vmul.f32 %v1326, %v1218
    %v1329 = vadd.f32 %v1323, %v1327
    %v1330 = vadd.f32 %v1324, %v1328
    %s1331 = sld [smem:[#allocation18 + $0x10]]
    %v1332 = vstv %s1331
    %v1333 = vmul.f32 %v1332, %v1115
    %v1334 = vmul.f32 %v1332, %v1116
    %v1335 = vadd.f32 %v1329, %v1333
    %v1336 = vadd.f32 %v1330, %v1334
    %s1337 = sld [smem:[#allocation18 + $0x11]]
    %v1338 = vstv %s1337
    %v1339 = vmul.f32 %v1338, %v1220
    %v1340 = vmul.f32 %v1338, %v1222
    %v1341 = vadd.f32 %v1335, %v1339
    %v1342 = vadd.f32 %v1336, %v1340
    %s1343 = sld [smem:[#allocation18 + $0x12]]
    %v1344 = vstv %s1343
    %v1345 = vmul.f32 %v1344, %v1224
    %v1346 = vmul.f32 %v1344, %v1226
    %v1347 = vadd.f32 %v1341, %v1345
    %v1348 = vadd.f32 %v1342, %v1346
    %s1349 = sld [smem:[#allocation18 + $0x13]]
    %v1350 = vstv %s1349
    %v1351 = vmul.f32 %v1350, %v1160
    %v1352 = vmul.f32 %v1350, %v1161
    %v1353 = vadd.f32 %v1347, %v1351
    %v1354 = vadd.f32 %v1348, %v1352
    %s1355 = sld [smem:[#allocation18 + $0x14]]
    %v1356 = vstv %s1355
    %v1357 = vmul.f32 %v1356, %v1228
    %v1358 = vmul.f32 %v1356, %v1230
    %v1359 = vadd.f32 %v1353, %v1357
    %v1360 = vadd.f32 %v1354, %v1358
    %s1361 = sld [smem:[#allocation18 + $0x15]]
    %v1362 = vstv %s1361
    %v1363 = vmul.f32 %v1362, %v1232
    %v1364 = vmul.f32 %v1362, %v1234
    %v1365 = vadd.f32 %v1359, %v1363
    %v1366 = vadd.f32 %v1360, %v1364
    %s1367 = sld [smem:[#allocation18 + $0x16]]
    %v1368 = vstv %s1367
    %v1369 = vmul.f32 %v1368, %v1205
    %v1370 = vmul.f32 %v1368, %v1206
    %v1371 = vadd.f32 %v1365, %v1369
    %v1372 = vadd.f32 %v1366, %v1370
    %s1373 = sld [smem:[#allocation18 + $0x17]]
    %v1374 = vstv %s1373
    %v1375 = vmul.f32 %v1374, %v1236
    %v1376 = vmul.f32 %v1374, %v1238
    %v1377 = vadd.f32 %v1371, %v1375
    %v1378 = vadd.f32 %v1372, %v1376
    %s1379 = sld [smem:[#allocation18 + $0x18]]
    %v1380 = vstv %s1379
    %v1381 = vmul.f32 %v1380, %v1208
    %v1382 = vmul.f32 %v1380, %v1210
    %s1383 = sld [smem:[#allocation18 + $0x19]]
    %v1384 = vstv %s1383
    %v1385 = vmul.f32 %v1384, %v1070
    %v1386 = vmul.f32 %v1384, %v1071
    %v1387 = vadd.f32 %v1381, %v1385
    %v1388 = vadd.f32 %v1382, %v1386
    %s1389 = sld [smem:[#allocation18 + $0x1a]]
    %v1390 = vstv %s1389
    %v1391 = vmul.f32 %v1390, %v1212
    %v1392 = vmul.f32 %v1390, %v1214
    %v1393 = vadd.f32 %v1387, %v1391
    %v1394 = vadd.f32 %v1388, %v1392
    %s1395 = sld [smem:[#allocation18 + $0x1b]]
    %v1396 = vstv %s1395
    %v1397 = vmul.f32 %v1396, %v1216
    %v1398 = vmul.f32 %v1396, %v1218
    %v1399 = vadd.f32 %v1393, %v1397
    %v1400 = vadd.f32 %v1394, %v1398
    %s1401 = sld [smem:[#allocation18 + $0x1c]]
    %v1402 = vstv %s1401
    %v1403 = vmul.f32 %v1402, %v1115
    %v1404 = vmul.f32 %v1402, %v1116
    %v1405 = vadd.f32 %v1399, %v1403
    %v1406 = vadd.f32 %v1400, %v1404
    %s1407 = sld [smem:[#allocation18 + $0x1d]]
    %v1408 = vstv %s1407
    %v1409 = vmul.f32 %v1408, %v1220
    %v1410 = vmul.f32 %v1408, %v1222
    %v1411 = vadd.f32 %v1405, %v1409
    %v1412 = vadd.f32 %v1406, %v1410
    %s1413 = sld [smem:[#allocation18 + $0x1e]]
    %v1414 = vstv %s1413
    %v1415 = vmul.f32 %v1414, %v1224
    %v1416 = vmul.f32 %v1414, %v1226
    %v1417 = vadd.f32 %v1411, %v1415
    %v1418 = vadd.f32 %v1412, %v1416
    %s1419 = sld [smem:[#allocation18 + $0x1f]]
    %v1420 = vstv %s1419
    %v1421 = vmul.f32 %v1420, %v1160
    %v1422 = vmul.f32 %v1420, %v1161
    %v1423 = vadd.f32 %v1417, %v1421
    %v1424 = vadd.f32 %v1418, %v1422
    %s1425 = sld [smem:[#allocation18 + $0x20]]
    %v1426 = vstv %s1425
    %v1427 = vmul.f32 %v1426, %v1228
    %v1428 = vmul.f32 %v1426, %v1230
    %v1429 = vadd.f32 %v1423, %v1427
    %v1430 = vadd.f32 %v1424, %v1428
    %s1431 = sld [smem:[#allocation18 + $0x21]]
    %v1432 = vstv %s1431
    %v1433 = vmul.f32 %v1432, %v1232
    %v1434 = vmul.f32 %v1432, %v1234
    %v1435 = vadd.f32 %v1429, %v1433
    %v1436 = vadd.f32 %v1430, %v1434
    %s1437 = sld [smem:[#allocation18 + $0x22]]
    %v1438 = vstv %s1437
    %v1439 = vmul.f32 %v1438, %v1205
    %v1440 = vmul.f32 %v1438, %v1206
    %v1441 = vadd.f32 %v1435, %v1439
    %v1442 = vadd.f32 %v1436, %v1440
    %s1443 = sld [smem:[#allocation18 + $0x23]]
    %v1444 = vstv %s1443
    %v1445 = vmul.f32 %v1444, %v1236
    %v1446 = vmul.f32 %v1444, %v1238
    %v1447 = vadd.f32 %v1441, %v1445
    %v1448 = vadd.f32 %v1442, %v1446
    %s1449 = sld [smem:[#allocation18 + $0x24]]
    %v1450 = vstv %s1449
    %v1451 = vmul.f32 %v1450, %v1208
    %v1452 = vmul.f32 %v1450, %v1210
    %s1453 = sld [smem:[#allocation18 + $0x25]]
    %v1454 = vstv %s1453
    %v1455 = vmul.f32 %v1454, %v1070
    %v1456 = vmul.f32 %v1454, %v1071
    %v1457 = vadd.f32 %v1451, %v1455
    %v1458 = vadd.f32 %v1452, %v1456
    %s1459 = sld [smem:[#allocation18 + $0x26]]
    %v1460 = vstv %s1459
    %v1461 = vmul.f32 %v1460, %v1212
    %v1462 = vmul.f32 %v1460, %v1214
    %v1463 = vadd.f32 %v1457, %v1461
    %v1464 = vadd.f32 %v1458, %v1462
    %s1465 = sld [smem:[#allocation18 + $0x27]]
    %v1466 = vstv %s1465
    %v1467 = vmul.f32 %v1466, %v1216
    %v1468 = vmul.f32 %v1466, %v1218
    %v1469 = vadd.f32 %v1463, %v1467
    %v1470 = vadd.f32 %v1464, %v1468
    %s1471 = sld [smem:[#allocation18 + $0x28]]
    %v1472 = vstv %s1471
    %v1473 = vmul.f32 %v1472, %v1115
    %v1474 = vmul.f32 %v1472, %v1116
    %v1475 = vadd.f32 %v1469, %v1473
    %v1476 = vadd.f32 %v1470, %v1474
    %s1477 = sld [smem:[#allocation18 + $0x29]]
    %v1478 = vstv %s1477
    %v1479 = vmul.f32 %v1478, %v1220
    %v1480 = vmul.f32 %v1478, %v1222
    %v1481 = vadd.f32 %v1475, %v1479
    %v1482 = vadd.f32 %v1476, %v1480
    %s1483 = sld [smem:[#allocation18 + $0x2a]]
    %v1484 = vstv %s1483
    %v1485 = vmul.f32 %v1484, %v1224
    %v1486 = vmul.f32 %v1484, %v1226
    %v1487 = vadd.f32 %v1481, %v1485
    %v1488 = vadd.f32 %v1482, %v1486
    %s1489 = sld [smem:[#allocation18 + $0x2b]]
    %v1490 = vstv %s1489
    %v1491 = vmul.f32 %v1490, %v1160
    %v1492 = vmul.f32 %v1490, %v1161
    %v1493 = vadd.f32 %v1487, %v1491
    %v1494 = vadd.f32 %v1488, %v1492
    %s1495 = sld [smem:[#allocation18 + $0x2c]]
    %v1496 = vstv %s1495
    %v1497 = vmul.f32 %v1496, %v1228
    %v1498 = vmul.f32 %v1496, %v1230
    %v1499 = vadd.f32 %v1493, %v1497
    %v1500 = vadd.f32 %v1494, %v1498
    %s1501 = sld [smem:[#allocation18 + $0x2d]]
    %v1502 = vstv %s1501
    %v1503 = vmul.f32 %v1502, %v1232
    %v1504 = vmul.f32 %v1502, %v1234
    %v1505 = vadd.f32 %v1499, %v1503
    %v1506 = vadd.f32 %v1500, %v1504
    %s1507 = sld [smem:[#allocation18 + $0x2e]]
    %v1508 = vstv %s1507
    %v1509 = vmul.f32 %v1508, %v1205
    %v1510 = vmul.f32 %v1508, %v1206
    %v1511 = vadd.f32 %v1505, %v1509
    %v1512 = vadd.f32 %v1506, %v1510
    %s1513 = sld [smem:[#allocation18 + $0x2f]]
    %v1514 = vstv %s1513
    %v1515 = vmul.f32 %v1514, %v1236
    %v1516 = vmul.f32 %v1514, %v1238
    %v1517 = vadd.f32 %v1511, %v1515
    %v1518 = vadd.f32 %v1512, %v1516
    %s1519 = sld [smem:[#allocation19]]
    %v1520 = vstv %s1519
    %v1521 = vadd.f32 %v1307, %v1520
    %v1522 = vadd.f32 %v1308, %v1520
    %s1523 = sld [smem:[#allocation19 + $0x1]]
    %v1524 = vstv %s1523
    %v1525 = vadd.f32 %v1377, %v1524
    %v1526 = vadd.f32 %v1378, %v1524
    %s1527 = sld [smem:[#allocation19 + $0x2]]
    %v1528 = vstv %s1527
    %v1529 = vadd.f32 %v1447, %v1528
    %v1530 = vadd.f32 %v1448, %v1528
    %s1531 = sld [smem:[#allocation19 + $0x3]]
    %v1532 = vstv %s1531
    %v1533 = vadd.f32 %v1517, %v1532
    %v1534 = vadd.f32 %v1518, %v1532
    %1535 = vst [vmem:[#allocation21] sm:$0xff] %v1521
    %1536 = vst [vmem:[#allocation21 + $0x8] sm:$0xff] %v1525
    %1537 = vst [vmem:[#allocation21 + $0x10] sm:$0xff] %v1529
    %1538 = vst [vmem:[#allocation21 + $0x18] sm:$0xff] %v1533
    %1539 = vst [vmem:[#allocation21 + $0x20] sm:$0xff] %v1522
    %1540 = vst [vmem:[#allocation21 + $0x28] sm:$0xff] %v1526
    %1541 = vst [vmem:[#allocation21 + $0x30] sm:$0xff] %v1530
    %1542 = vst [vmem:[#allocation21 + $0x38] sm:$0xff] %v1534
    // Predicated region
    $region90: #{tpu_custom_call.1} parent=1 // pred_check
      _
    $region91: #{tpu_custom_call.1} parent=1 // pred_check_branch
      %1544 = sbr.rel (0) target = $region93
    $region92: #{tpu_custom_call.1} parent=1 // pred_region
      %s1546 = ssub.s32 1024, 1024
      %1547 = vsyncadd [#allocation4], %s1546
      %s1548 = sshll.u32 [#allocation21], 4
      %s1549 = int_to_ptr.vmem [resolvable:$true] %s1548
      %1554 = dma.vmem_to_hbm [thread:$0]  %s1549, 1024, %s11, [#allocation4], 128, 128, 8
    $region93: #{tpu_custom_call.1} parent=1 // pred_fallthru
      _
    // Predicated region
    $region94: #{tpu_custom_call.1} parent=1 // pred_check
      _
    $region95: #{tpu_custom_call.1} parent=1 // pred_check_branch
      %1556 = sbr.rel (0) target = $region97
    $region96: #{tpu_custom_call.1} parent=1 // pred_region
      %1557 = dma.done [#allocation4], 1024
    $region97: #{tpu_custom_call.1} parent=1 // pred_fallthru
      _
    %1558 = vsyncpa [#allocation3], 1
    %1559 = vsyncpa [#allocation7], 1
    %1560 = vsyncpa [#allocation4], 1
    %1561 = vsyncpa [#allocation5], 1
    %1562 = vsyncpa [#allocation11], 1
    %1563 = vsyncpa [#allocation14], 1
    %1564 = vsyncpa [#allocation17], 1
    %1565 = vsyncpa [#allocation20], 1

</llo_original>
